<compile_context>
chip_gen: v7x
topology: tpu7x:2x2x1
jax: 0.10.0
libtpu: 0.0.40
codegen_flags: <defaults>
</compile_context>

<pallas_src>
import jax
import jax.numpy as jnp
from jax.experimental import pallas as pl
from jax.experimental.pallas import tpu as pltpu

BN_EPS = 1e-5
LANE = 128
SUBLANE = 8            # f32 sublane granule; rows per view are padded to this


def _round_up(n: int, m: int) -> int:
    return ((n + m - 1) // m) * m


def _round_up_lane(n: int) -> int:
    return _round_up(n, LANE)


# ----------------------------------------------------------------------------
# Fused whole-network kernel (single invocation; both views stacked along M)
# ----------------------------------------------------------------------------
def _simsiam_kernel(x1_ref, x2_ref,
                    wbb_ref, bbb_ref,
                    wp1_ref, gp1_ref, bp1_ref,
                    wp2_ref, gp2_ref, bp2_ref,
                    wp3_ref, gp3_ref, bp3_ref,
                    wh1_ref, gh1_ref, bh1_ref,
                    wh2_ref, bh2_ref,
                    bb_out_ref, z_out_ref, p_out_ref,
                    xbuf_ref):
    B = x1_ref.shape[0]                      # real per-view batch
    rows_per_view = xbuf_ref.shape[1]        # B padded to the sublane granule
    m_pad = 2 * rows_per_view
    in_pad = xbuf_ref.shape[2]
    n_inv = 1.0 / B                          # per-view biased BN statistics

    # ---- stack both views along M (sublane-aligned slots, zero pad rows) ---
    xbuf_ref[...] = jnp.zeros_like(xbuf_ref)
    xbuf_ref[0, :B, :] = x1_ref[...]
    xbuf_ref[1, :B, :] = x2_ref[...]
    # (2, rows_per_view, in_pad) -> (m_pad, in_pad): leading-dim merge, free.
    x = xbuf_ref[...].reshape(m_pad, in_pad).astype(jnp.bfloat16)

    # ---- per-row view masks (hoisted once) ----------------------------------
    rows = jax.lax.broadcasted_iota(jnp.int32, (m_pad, 1), 0)
    is_v1 = rows < rows_per_view
    m1 = (rows < B).astype(jnp.float32)                         # real view-1 rows
    m2 = jnp.logical_and(rows >= rows_per_view,
                         rows < rows_per_view + B).astype(jnp.float32)

    def bn(y, gamma, beta):
        """BatchNorm1d (training mode), independent batch stats per view,
        folded into a single per-view scale/shift row."""
        def view_scale_shift(mask):
            ym = y * mask
            mean = jnp.sum(ym, axis=0, keepdims=True) * n_inv
            var = jnp.sum(ym * y, axis=0, keepdims=True) * n_inv - mean * mean
            s = gamma * jax.lax.rsqrt(jnp.maximum(var, 0.0) + BN_EPS)
            return s, beta - mean * s
        s1, t1 = view_scale_shift(m1)
        s2, t2 = view_scale_shift(m2)
        s = jnp.where(is_v1, s1, s2)
        t = jnp.where(is_v1, t1, t2)
        return y * s + t

    # ---- backbone stand-in: Linear (+bias only on the returned features) ---
    bb = jnp.dot(x, wbb_ref[...], preferred_element_type=jnp.float32)
    bb_out_ref[...] = bb + bbb_ref[...]
    # Constant bias row is cancelled by proj1's BN mean subtraction -> feed
    # the projector the un-biased activations.
    h = bb.astype(jnp.bfloat16)

    # ---- projection MLP: 3 x (Linear -> BN [-> ReLU, except last]) ---------
    y = jnp.dot(h, wp1_ref[...], preferred_element_type=jnp.float32)
    h = jnp.maximum(bn(y, gp1_ref[...], bp1_ref[...]), 0.0).astype(jnp.bfloat16)

    y = jnp.dot(h, wp2_ref[...], preferred_element_type=jnp.float32)
    h = jnp.maximum(bn(y, gp2_ref[...], bp2_ref[...]), 0.0).astype(jnp.bfloat16)

    y = jnp.dot(h, wp3_ref[...], preferred_element_type=jnp.float32)
    z = bn(y, gp3_ref[...], bp3_ref[...])            # output fc: BN, no ReLU
    z_out_ref[...] = z
    h = z.astype(jnp.bfloat16)

    # ---- prediction MLP: Linear -> BN -> ReLU, then plain Linear (+bias) ---
    y = jnp.dot(h, wh1_ref[...], preferred_element_type=jnp.float32)
    h = jnp.maximum(bn(y, gh1_ref[...], bh1_ref[...]), 0.0).astype(jnp.bfloat16)

    p = jnp.dot(h, wh2_ref[...], preferred_element_type=jnp.float32)
    p_out_ref[...] = p + bh2_ref[...]


# ----------------------------------------------------------------------------
# Parameter construction (padding / bf16 casting done ONCE here, not per call)
# ----------------------------------------------------------------------------
def init_simsiam_params(key, in_feat, backbone_dim, emb_dim, pred_hidden):
    ks = jax.random.split(key, 6)
    in_p = _round_up_lane(in_feat)
    bb_p = _round_up_lane(backbone_dim)
    emb_p = _round_up_lane(emb_dim)
    hid_p = _round_up_lane(pred_hidden)

    def linear(k, din, dout, scale=0.05):
        kw, kb = jax.random.split(k)
        w = scale * jax.random.normal(kw, (din, dout), jnp.float32)
        b = scale * jax.random.normal(kb, (dout,), jnp.float32)
        return w, b

    def pad_w(w, rp, cp):
        return jnp.pad(w, ((0, rp - w.shape[0]), (0, cp - w.shape[1]))
                       ).astype(jnp.bfloat16)

    def pad_vec(v, cp):
        return jnp.pad(v, (0, cp - v.shape[0])).reshape(1, cp).astype(jnp.float32)

    wbb, bbb = linear(ks[0], in_feat, backbone_dim)
    # Linear biases before BatchNorm are exactly cancelled by the BN mean
    # subtraction -> folded out (not passed to the kernel).
    wp1, _ = linear(ks[1], backbone_dim, emb_dim)
    wp2, _ = linear(ks[2], emb_dim, emb_dim)
    wp3, _ = linear(ks[3], emb_dim, emb_dim)
    wh1, _ = linear(ks[4], emb_dim, pred_hidden)
    wh2, bh2 = linear(ks[5], pred_hidden, emb_dim)

    def gamma(d, dp):   # BN gamma = 1 on real lanes, 0 on padded lanes
        return pad_vec(jnp.ones((d,), jnp.float32), dp)

    def beta(dp):       # BN beta = 0 everywhere
        return jnp.zeros((1, dp), jnp.float32)

    params = {
        "wbb": pad_w(wbb, in_p, bb_p),   "bbb": pad_vec(bbb, bb_p),
        "wp1": pad_w(wp1, bb_p, emb_p),  "gp1": gamma(emb_dim, emb_p),     "bp1": beta(emb_p),
        "wp2": pad_w(wp2, emb_p, emb_p), "gp2": gamma(emb_dim, emb_p),     "bp2": beta(emb_p),
        "wp3": pad_w(wp3, emb_p, emb_p), "gp3": gamma(emb_dim, emb_p),     "bp3": beta(emb_p),
        "wh1": pad_w(wh1, emb_p, hid_p), "gh1": gamma(pred_hidden, hid_p), "bh1": beta(hid_p),
        "wh2": pad_w(wh2, hid_p, emb_p), "bh2": pad_vec(bh2, emb_p),
    }
    dims = dict(in_feat=in_feat, in_pad=in_p,
                backbone_dim=backbone_dim, backbone_pad=bb_p,
                emb_dim=emb_dim, emb_pad=emb_p,
                pred_hidden=pred_hidden, pred_pad=hid_p)
    return params, dims


# ----------------------------------------------------------------------------
# Forward wrapper: single gridless pallas_call, both views merged in-kernel
# ----------------------------------------------------------------------------
def make_simsiam_forward(dims):
    in_feat = dims["in_feat"]
    in_pad = dims["in_pad"]
    bb_pad = dims["backbone_pad"]
    emb_pad = dims["emb_pad"]
    bdim = dims["backbone_dim"]
    edim = dims["emb_dim"]

    @jax.jit
    def fwd(params, x1, x2):
        B = x1.shape[0]
        x1f = x1.reshape(B, -1)            # flatten NCHW (free reshape)
        x2f = x2.reshape(B, -1)
        if in_pad != in_feat:              # lane-pad only if actually needed
            x1f = jnp.pad(x1f, ((0, 0), (0, in_pad - in_feat)))
            x2f = jnp.pad(x2f, ((0, 0), (0, in_pad - in_feat)))

        rows_per_view = _round_up(B, SUBLANE)
        m_pad = 2 * rows_per_view

        args = (x1f, x2f,
                params["wbb"], params["bbb"],
                params["wp1"], params["gp1"], params["bp1"],
                params["wp2"], params["gp2"], params["bp2"],
                params["wp3"], params["gp3"], params["bp3"],
                params["wh1"], params["gh1"], params["bh1"],
                params["wh2"], params["bh2"])

        out_shape = (
            jax.ShapeDtypeStruct((m_pad, bb_pad), jnp.float32),
            jax.ShapeDtypeStruct((m_pad, emb_pad), jnp.float32),
            jax.ShapeDtypeStruct((m_pad, emb_pad), jnp.float32),
        )

        bb_o, z_o, p_o = pl.pallas_call(
            _simsiam_kernel,
            out_shape=out_shape,
            # Stacked, sublane-aligned input slab lives in VMEM scratch.
            scratch_shapes=[pltpu.VMEM((2, rows_per_view, in_pad), jnp.float32)],
        )(*args)

        r = rows_per_view
        # Slice padded rows/lanes back to the true per-view shapes.
        return ((bb_o[:B, :bdim], z_o[:B, :edim], p_o[:B, :edim]),
                (bb_o[r:r + B, :bdim], z_o[r:r + B, :edim], p_o[r:r + B, :edim]))

    return fwd


# ----------------------------------------------------------------------------
if __name__ == "__main__":
    # Small shapes consistent with the module:
    #   images:      (batch=2, C=4, H=16, W=16) -> flattened features = 1024
    #   backbone_dim = 64  (stand-in for resnet fc.in_features)
    #   emb_dim      = 32  (cfg.emb_dim; projector hidden/out, predictor in/out)
    #   pred_hidden  = 16  (scaled-down predictor bottleneck, default 512)
    key = jax.random.PRNGKey(0)
    kx1, kx2, kp = jax.random.split(key, 3)

    B, C, H, W = 2, 4, 16, 16
    backbone_dim, emb_dim, pred_hidden = 64, 32, 16
    in_feat = C * H * W

    x1 = jax.random.normal(kx1, (B, C, H, W), jnp.float32)
    x2 = jax.random.normal(kx2, (B, C, H, W), jnp.float32)

    params, dims = init_simsiam_params(kp, in_feat, backbone_dim, emb_dim,
                                       pred_hidden)
    simsiam_forward = make_simsiam_forward(dims)

    (bb1, z1, p1), (bb2, z2, p2) = simsiam_forward(params, x1, x2)
    jax.block_until_ready((bb1, z1, p1, bb2, z2, p2))

    assert bb1.shape == (B, backbone_dim) and bb2.shape == (B, backbone_dim)
    assert z1.shape == (B, emb_dim) and z2.shape == (B, emb_dim)
    assert p1.shape == (B, emb_dim) and p2.shape == (B, emb_dim)
    for t in (bb1, z1, p1, bb2, z2, p2):
        assert bool(jnp.all(jnp.isfinite(t)))
    print("KERNEL_OK")
</pallas_src>

<mosaic_0001>
module attributes {stable_mosaic.version = 11 : i64} {
  func.func @_simsiam_kernel(%arg0: memref<2x1024xf32, #tpu.memory_space<vmem>>, %arg1: memref<2x1024xf32, #tpu.memory_space<vmem>>, %arg2: memref<1024x128xbf16, #tpu.memory_space<vmem>>, %arg3: memref<1x128xf32, #tpu.memory_space<vmem>>, %arg4: memref<128x128xbf16, #tpu.memory_space<vmem>>, %arg5: memref<1x128xf32, #tpu.memory_space<vmem>>, %arg6: memref<1x128xf32, #tpu.memory_space<vmem>>, %arg7: memref<128x128xbf16, #tpu.memory_space<vmem>>, %arg8: memref<1x128xf32, #tpu.memory_space<vmem>>, %arg9: memref<1x128xf32, #tpu.memory_space<vmem>>, %arg10: memref<128x128xbf16, #tpu.memory_space<vmem>>, %arg11: memref<1x128xf32, #tpu.memory_space<vmem>>, %arg12: memref<1x128xf32, #tpu.memory_space<vmem>>, %arg13: memref<128x128xbf16, #tpu.memory_space<vmem>>, %arg14: memref<1x128xf32, #tpu.memory_space<vmem>>, %arg15: memref<1x128xf32, #tpu.memory_space<vmem>>, %arg16: memref<128x128xbf16, #tpu.memory_space<vmem>>, %arg17: memref<1x128xf32, #tpu.memory_space<vmem>>, %arg18: memref<16x128xf32, #tpu.memory_space<vmem>>, %arg19: memref<16x128xf32, #tpu.memory_space<vmem>>, %arg20: memref<16x128xf32, #tpu.memory_space<vmem>>, %arg21: memref<2x8x1024xf32, #tpu.memory_space<vmem>>) attributes {dimension_semantics = [], scalar_prefetch = 0 : i64, scratch_operands = 1 : i64, tpu.core_type = #tpu.core_type<tc>} {
    %cst = arith.constant 0.000000e+00 : f32
    %0 = vector.broadcast %cst : f32 to vector<2x8x1024xf32>
    %c0 = arith.constant 0 : index
    %c0_0 = arith.constant 0 : index
    %c0_1 = arith.constant 0 : index
    %1 = vector.load %arg21[%c0, %c0_0, %c0_1] : memref<2x8x1024xf32, #tpu.memory_space<vmem>>, vector<2x8x1024xf32>
    tpu.vector_store %arg21[%c0, %c0_0, %c0_1], %0 {strides = array<i32>} : memref<2x8x1024xf32, #tpu.memory_space<vmem>>, vector<2x8x1024xf32>,
    %c0_2 = arith.constant 0 : index
    %c0_3 = arith.constant 0 : index
    %2 = vector.load %arg0[%c0_2, %c0_3] : memref<2x1024xf32, #tpu.memory_space<vmem>>, vector<2x1024xf32>
    %c0_4 = arith.constant 0 : index
    %c0_5 = arith.constant 0 : index
    %c0_6 = arith.constant 0 : index
    %3 = vector.load %arg21[%c0_4, %c0_5, %c0_6] : memref<2x8x1024xf32, #tpu.memory_space<vmem>>, vector<1x2x1024xf32>
    %4 = vector.shape_cast %3 : vector<1x2x1024xf32> to vector<2x1024xf32>
    %5 = vector.shape_cast %2 : vector<2x1024xf32> to vector<1x2x1024xf32>
    tpu.vector_store %arg21[%c0_4, %c0_5, %c0_6], %5 {strides = array<i32>} : memref<2x8x1024xf32, #tpu.memory_space<vmem>>, vector<1x2x1024xf32>,
    %c0_7 = arith.constant 0 : index
    %c0_8 = arith.constant 0 : index
    %6 = vector.load %arg1[%c0_7, %c0_8] : memref<2x1024xf32, #tpu.memory_space<vmem>>, vector<2x1024xf32>
    %c1 = arith.constant 1 : index
    %c0_9 = arith.constant 0 : index
    %c0_10 = arith.constant 0 : index
    %7 = vector.load %arg21[%c1, %c0_9, %c0_10] : memref<2x8x1024xf32, #tpu.memory_space<vmem>>, vector<1x2x1024xf32>
    %8 = vector.shape_cast %7 : vector<1x2x1024xf32> to vector<2x1024xf32>
    %9 = vector.shape_cast %6 : vector<2x1024xf32> to vector<1x2x1024xf32>
    tpu.vector_store %arg21[%c1, %c0_9, %c0_10], %9 {strides = array<i32>} : memref<2x8x1024xf32, #tpu.memory_space<vmem>>, vector<1x2x1024xf32>,
    %c0_11 = arith.constant 0 : index
    %c0_12 = arith.constant 0 : index
    %c0_13 = arith.constant 0 : index
    %10 = vector.load %arg21[%c0_11, %c0_12, %c0_13] : memref<2x8x1024xf32, #tpu.memory_space<vmem>>, vector<2x8x1024xf32>
    %11 = vector.shape_cast %10 : vector<2x8x1024xf32> to vector<16x1024xf32>
    %12 = arith.truncf %11 : vector<16x1024xf32> to vector<16x1024xbf16>
    %13 = tpu.iota {dimensions = array<i32: 0>} : vector<16x1xi32>
    %c8_i32 = arith.constant 8 : i32
    %14 = vector.broadcast %c8_i32 : i32 to vector<16x1xi32>
    %15 = arith.cmpi slt, %13, %14 : vector<16x1xi32>
    %c2_i32 = arith.constant 2 : i32
    %16 = vector.broadcast %c2_i32 : i32 to vector<16x1xi32>
    %17 = arith.cmpi slt, %13, %16 : vector<16x1xi32>
    %18 = arith.extui %17 : vector<16x1xi1> to vector<16x1xi32>
    %19 = arith.sitofp %18 : vector<16x1xi32> to vector<16x1xf32>
    %c8_i32_14 = arith.constant 8 : i32
    %20 = vector.broadcast %c8_i32_14 : i32 to vector<16x1xi32>
    %21 = arith.cmpi sge, %13, %20 : vector<16x1xi32>
    %c10_i32 = arith.constant 10 : i32
    %22 = vector.broadcast %c10_i32 : i32 to vector<16x1xi32>
    %23 = arith.cmpi slt, %13, %22 : vector<16x1xi32>
    %24 = arith.andi %21, %23 : vector<16x1xi1>
    %25 = arith.extui %24 : vector<16x1xi1> to vector<16x1xi32>
    %26 = arith.sitofp %25 : vector<16x1xi32> to vector<16x1xf32>
    %c0_15 = arith.constant 0 : index
    %c0_16 = arith.constant 0 : index
    %27 = vector.load %arg2[%c0_15, %c0_16] : memref<1024x128xbf16, #tpu.memory_space<vmem>>, vector<1024x128xbf16>
    %cst_17 = arith.constant dense<0.000000e+00> : vector<16x128xf32>
    %28 = tpu.matmul %12, %27, %cst_17 {dimension_numbers = #tpu.dot_dimension_numbers<[1], [0], [0], [1], [0, 0, 1, 1], [], []>} : vector<16x1024xbf16>, vector<1024x128xbf16>, vector<16x128xf32> -> vector<16x128xf32>
    %c0_18 = arith.constant 0 : index
    %c0_19 = arith.constant 0 : index
    %29 = vector.load %arg3[%c0_18, %c0_19] : memref<1x128xf32, #tpu.memory_space<vmem>>, vector<1x128xf32>
    %30 = vector.broadcast %29 : vector<1x128xf32> to vector<16x128xf32>
    %31 = arith.addf %28, %30 : vector<16x128xf32>
    %c0_20 = arith.constant 0 : index
    %c0_21 = arith.constant 0 : index
    %32 = vector.load %arg18[%c0_20, %c0_21] : memref<16x128xf32, #tpu.memory_space<vmem>>, vector<16x128xf32>
    tpu.vector_store %arg18[%c0_20, %c0_21], %31 {strides = array<i32>} : memref<16x128xf32, #tpu.memory_space<vmem>>, vector<16x128xf32>,
    %33 = arith.truncf %28 : vector<16x128xf32> to vector<16x128xbf16>
    %c0_22 = arith.constant 0 : index
    %c0_23 = arith.constant 0 : index
    %34 = vector.load %arg4[%c0_22, %c0_23] : memref<128x128xbf16, #tpu.memory_space<vmem>>, vector<128x128xbf16>
    %cst_24 = arith.constant dense<0.000000e+00> : vector<16x128xf32>
    %35 = tpu.matmul %33, %34, %cst_24 {dimension_numbers = #tpu.dot_dimension_numbers<[1], [0], [0], [1], [0, 0, 1, 1], [], []>} : vector<16x128xbf16>, vector<128x128xbf16>, vector<16x128xf32> -> vector<16x128xf32>
    %c0_25 = arith.constant 0 : index
    %c0_26 = arith.constant 0 : index
    %36 = vector.load %arg5[%c0_25, %c0_26] : memref<1x128xf32, #tpu.memory_space<vmem>>, vector<1x128xf32>
    %c0_27 = arith.constant 0 : index
    %c0_28 = arith.constant 0 : index
    %37 = vector.load %arg6[%c0_27, %c0_28] : memref<1x128xf32, #tpu.memory_space<vmem>>, vector<1x128xf32>
    %38 = vector.broadcast %19 : vector<16x1xf32> to vector<16x128xf32>
    %39 = arith.mulf %35, %38 : vector<16x128xf32>
    %cst_29 = arith.constant dense<0.000000e+00> : vector<128xf32>
    %40 = vector.multi_reduction <add>, %39, %cst_29 [0] : vector<16x128xf32> to vector<128xf32>
    %41 = vector.shape_cast %40 : vector<128xf32> to vector<1x128xf32>
    %cst_30 = arith.constant 5.000000e-01 : f32
    %42 = vector.broadcast %cst_30 : f32 to vector<1x128xf32>
    %43 = arith.mulf %41, %42 : vector<1x128xf32>
    %44 = arith.mulf %39, %35 : vector<16x128xf32>
    %cst_31 = arith.constant dense<0.000000e+00> : vector<128xf32>
    %45 = vector.multi_reduction <add>, %44, %cst_31 [0] : vector<16x128xf32> to vector<128xf32>
    %46 = vector.shape_cast %45 : vector<128xf32> to vector<1x128xf32>
    %cst_32 = arith.constant 5.000000e-01 : f32
    %47 = vector.broadcast %cst_32 : f32 to vector<1x128xf32>
    %48 = arith.mulf %46, %47 : vector<1x128xf32>
    %49 = arith.mulf %43, %43 : vector<1x128xf32>
    %50 = arith.subf %48, %49 : vector<1x128xf32>
    %cst_33 = arith.constant 0.000000e+00 : f32
    %51 = vector.broadcast %cst_33 : f32 to vector<1x128xf32>
    %52 = arith.maximumf %50, %51 : vector<1x128xf32>
    %cst_34 = arith.constant 9.99999974E-6 : f32
    %53 = vector.broadcast %cst_34 : f32 to vector<1x128xf32>
    %54 = arith.addf %52, %53 : vector<1x128xf32>
    %55 = math.rsqrt %54 : vector<1x128xf32>
    %56 = arith.mulf %36, %55 : vector<1x128xf32>
    %57 = arith.mulf %43, %56 : vector<1x128xf32>
    %58 = arith.subf %37, %57 : vector<1x128xf32>
    %59 = vector.broadcast %26 : vector<16x1xf32> to vector<16x128xf32>
    %60 = arith.mulf %35, %59 : vector<16x128xf32>
    %cst_35 = arith.constant dense<0.000000e+00> : vector<128xf32>
    %61 = vector.multi_reduction <add>, %60, %cst_35 [0] : vector<16x128xf32> to vector<128xf32>
    %62 = vector.shape_cast %61 : vector<128xf32> to vector<1x128xf32>
    %cst_36 = arith.constant 5.000000e-01 : f32
    %63 = vector.broadcast %cst_36 : f32 to vector<1x128xf32>
    %64 = arith.mulf %62, %63 : vector<1x128xf32>
    %65 = arith.mulf %60, %35 : vector<16x128xf32>
    %cst_37 = arith.constant dense<0.000000e+00> : vector<128xf32>
    %66 = vector.multi_reduction <add>, %65, %cst_37 [0] : vector<16x128xf32> to vector<128xf32>
    %67 = vector.shape_cast %66 : vector<128xf32> to vector<1x128xf32>
    %cst_38 = arith.constant 5.000000e-01 : f32
    %68 = vector.broadcast %cst_38 : f32 to vector<1x128xf32>
    %69 = arith.mulf %67, %68 : vector<1x128xf32>
    %70 = arith.mulf %64, %64 : vector<1x128xf32>
    %71 = arith.subf %69, %70 : vector<1x128xf32>
    %cst_39 = arith.constant 0.000000e+00 : f32
    %72 = vector.broadcast %cst_39 : f32 to vector<1x128xf32>
    %73 = arith.maximumf %71, %72 : vector<1x128xf32>
    %cst_40 = arith.constant 9.99999974E-6 : f32
    %74 = vector.broadcast %cst_40 : f32 to vector<1x128xf32>
    %75 = arith.addf %73, %74 : vector<1x128xf32>
    %76 = math.rsqrt %75 : vector<1x128xf32>
    %77 = arith.mulf %36, %76 : vector<1x128xf32>
    %78 = arith.mulf %64, %77 : vector<1x128xf32>
    %79 = arith.subf %37, %78 : vector<1x128xf32>
    %80 = vector.shape_cast %15 : vector<16x1xi1> to vector<16x1xi1>
    %81 = vector.broadcast %80 : vector<16x1xi1> to vector<16x128xi1>
    %82 = vector.shape_cast %56 : vector<1x128xf32> to vector<1x128xf32>
    %83 = vector.broadcast %82 : vector<1x128xf32> to vector<16x128xf32>
    %84 = vector.shape_cast %77 : vector<1x128xf32> to vector<1x128xf32>
    %85 = vector.broadcast %84 : vector<1x128xf32> to vector<16x128xf32>
    %86 = arith.select %81, %83, %85 : vector<16x128xi1>, vector<16x128xf32>
    %87 = vector.shape_cast %15 : vector<16x1xi1> to vector<16x1xi1>
    %88 = vector.broadcast %87 : vector<16x1xi1> to vector<16x128xi1>
    %89 = vector.shape_cast %58 : vector<1x128xf32> to vector<1x128xf32>
    %90 = vector.broadcast %89 : vector<1x128xf32> to vector<16x128xf32>
    %91 = vector.shape_cast %79 : vector<1x128xf32> to vector<1x128xf32>
    %92 = vector.broadcast %91 : vector<1x128xf32> to vector<16x128xf32>
    %93 = arith.select %88, %90, %92 : vector<16x128xi1>, vector<16x128xf32>
    %94 = arith.mulf %35, %86 : vector<16x128xf32>
    %95 = arith.addf %94, %93 : vector<16x128xf32>
    %cst_41 = arith.constant 0.000000e+00 : f32
    %96 = vector.broadcast %cst_41 : f32 to vector<16x128xf32>
    %97 = arith.maximumf %95, %96 : vector<16x128xf32>
    %98 = arith.truncf %97 : vector<16x128xf32> to vector<16x128xbf16>
    %c0_42 = arith.constant 0 : index
    %c0_43 = arith.constant 0 : index
    %99 = vector.load %arg7[%c0_42, %c0_43] : memref<128x128xbf16, #tpu.memory_space<vmem>>, vector<128x128xbf16>
    %cst_44 = arith.constant dense<0.000000e+00> : vector<16x128xf32>
    %100 = tpu.matmul %98, %99, %cst_44 {dimension_numbers = #tpu.dot_dimension_numbers<[1], [0], [0], [1], [0, 0, 1, 1], [], []>} : vector<16x128xbf16>, vector<128x128xbf16>, vector<16x128xf32> -> vector<16x128xf32>
    %c0_45 = arith.constant 0 : index
    %c0_46 = arith.constant 0 : index
    %101 = vector.load %arg8[%c0_45, %c0_46] : memref<1x128xf32, #tpu.memory_space<vmem>>, vector<1x128xf32>
    %c0_47 = arith.constant 0 : index
    %c0_48 = arith.constant 0 : index
    %102 = vector.load %arg9[%c0_47, %c0_48] : memref<1x128xf32, #tpu.memory_space<vmem>>, vector<1x128xf32>
    %103 = vector.broadcast %19 : vector<16x1xf32> to vector<16x128xf32>
    %104 = arith.mulf %100, %103 : vector<16x128xf32>
    %cst_49 = arith.constant dense<0.000000e+00> : vector<128xf32>
    %105 = vector.multi_reduction <add>, %104, %cst_49 [0] : vector<16x128xf32> to vector<128xf32>
    %106 = vector.shape_cast %105 : vector<128xf32> to vector<1x128xf32>
    %cst_50 = arith.constant 5.000000e-01 : f32
    %107 = vector.broadcast %cst_50 : f32 to vector<1x128xf32>
    %108 = arith.mulf %106, %107 : vector<1x128xf32>
    %109 = arith.mulf %104, %100 : vector<16x128xf32>
    %cst_51 = arith.constant dense<0.000000e+00> : vector<128xf32>
    %110 = vector.multi_reduction <add>, %109, %cst_51 [0] : vector<16x128xf32> to vector<128xf32>
    %111 = vector.shape_cast %110 : vector<128xf32> to vector<1x128xf32>
    %cst_52 = arith.constant 5.000000e-01 : f32
    %112 = vector.broadcast %cst_52 : f32 to vector<1x128xf32>
    %113 = arith.mulf %111, %112 : vector<1x128xf32>
    %114 = arith.mulf %108, %108 : vector<1x128xf32>
    %115 = arith.subf %113, %114 : vector<1x128xf32>
    %cst_53 = arith.constant 0.000000e+00 : f32
    %116 = vector.broadcast %cst_53 : f32 to vector<1x128xf32>
    %117 = arith.maximumf %115, %116 : vector<1x128xf32>
    %cst_54 = arith.constant 9.99999974E-6 : f32
    %118 = vector.broadcast %cst_54 : f32 to vector<1x128xf32>
    %119 = arith.addf %117, %118 : vector<1x128xf32>
    %120 = math.rsqrt %119 : vector<1x128xf32>
    %121 = arith.mulf %101, %120 : vector<1x128xf32>
    %122 = arith.mulf %108, %121 : vector<1x128xf32>
    %123 = arith.subf %102, %122 : vector<1x128xf32>
    %124 = vector.broadcast %26 : vector<16x1xf32> to vector<16x128xf32>
    %125 = arith.mulf %100, %124 : vector<16x128xf32>
    %cst_55 = arith.constant dense<0.000000e+00> : vector<128xf32>
    %126 = vector.multi_reduction <add>, %125, %cst_55 [0] : vector<16x128xf32> to vector<128xf32>
    %127 = vector.shape_cast %126 : vector<128xf32> to vector<1x128xf32>
    %cst_56 = arith.constant 5.000000e-01 : f32
    %128 = vector.broadcast %cst_56 : f32 to vector<1x128xf32>
    %129 = arith.mulf %127, %128 : vector<1x128xf32>
    %130 = arith.mulf %125, %100 : vector<16x128xf32>
    %cst_57 = arith.constant dense<0.000000e+00> : vector<128xf32>
    %131 = vector.multi_reduction <add>, %130, %cst_57 [0] : vector<16x128xf32> to vector<128xf32>
    %132 = vector.shape_cast %131 : vector<128xf32> to vector<1x128xf32>
    %cst_58 = arith.constant 5.000000e-01 : f32
    %133 = vector.broadcast %cst_58 : f32 to vector<1x128xf32>
    %134 = arith.mulf %132, %133 : vector<1x128xf32>
    %135 = arith.mulf %129, %129 : vector<1x128xf32>
    %136 = arith.subf %134, %135 : vector<1x128xf32>
    %cst_59 = arith.constant 0.000000e+00 : f32
    %137 = vector.broadcast %cst_59 : f32 to vector<1x128xf32>
    %138 = arith.maximumf %136, %137 : vector<1x128xf32>
    %cst_60 = arith.constant 9.99999974E-6 : f32
    %139 = vector.broadcast %cst_60 : f32 to vector<1x128xf32>
    %140 = arith.addf %138, %139 : vector<1x128xf32>
    %141 = math.rsqrt %140 : vector<1x128xf32>
    %142 = arith.mulf %101, %141 : vector<1x128xf32>
    %143 = arith.mulf %129, %142 : vector<1x128xf32>
    %144 = arith.subf %102, %143 : vector<1x128xf32>
    %145 = vector.shape_cast %15 : vector<16x1xi1> to vector<16x1xi1>
    %146 = vector.broadcast %145 : vector<16x1xi1> to vector<16x128xi1>
    %147 = vector.shape_cast %121 : vector<1x128xf32> to vector<1x128xf32>
    %148 = vector.broadcast %147 : vector<1x128xf32> to vector<16x128xf32>
    %149 = vector.shape_cast %142 : vector<1x128xf32> to vector<1x128xf32>
    %150 = vector.broadcast %149 : vector<1x128xf32> to vector<16x128xf32>
    %151 = arith.select %146, %148, %150 : vector<16x128xi1>, vector<16x128xf32>
    %152 = vector.shape_cast %15 : vector<16x1xi1> to vector<16x1xi1>
    %153 = vector.broadcast %152 : vector<16x1xi1> to vector<16x128xi1>
    %154 = vector.shape_cast %123 : vector<1x128xf32> to vector<1x128xf32>
    %155 = vector.broadcast %154 : vector<1x128xf32> to vector<16x128xf32>
    %156 = vector.shape_cast %144 : vector<1x128xf32> to vector<1x128xf32>
    %157 = vector.broadcast %156 : vector<1x128xf32> to vector<16x128xf32>
    %158 = arith.select %153, %155, %157 : vector<16x128xi1>, vector<16x128xf32>
    %159 = arith.mulf %100, %151 : vector<16x128xf32>
    %160 = arith.addf %159, %158 : vector<16x128xf32>
    %cst_61 = arith.constant 0.000000e+00 : f32
    %161 = vector.broadcast %cst_61 : f32 to vector<16x128xf32>
    %162 = arith.maximumf %160, %161 : vector<16x128xf32>
    %163 = arith.truncf %162 : vector<16x128xf32> to vector<16x128xbf16>
    %c0_62 = arith.constant 0 : index
    %c0_63 = arith.constant 0 : index
    %164 = vector.load %arg10[%c0_62, %c0_63] : memref<128x128xbf16, #tpu.memory_space<vmem>>, vector<128x128xbf16>
    %cst_64 = arith.constant dense<0.000000e+00> : vector<16x128xf32>
    %165 = tpu.matmul %163, %164, %cst_64 {dimension_numbers = #tpu.dot_dimension_numbers<[1], [0], [0], [1], [0, 0, 1, 1], [], []>} : vector<16x128xbf16>, vector<128x128xbf16>, vector<16x128xf32> -> vector<16x128xf32>
    %c0_65 = arith.constant 0 : index
    %c0_66 = arith.constant 0 : index
    %166 = vector.load %arg11[%c0_65, %c0_66] : memref<1x128xf32, #tpu.memory_space<vmem>>, vector<1x128xf32>
    %c0_67 = arith.constant 0 : index
    %c0_68 = arith.constant 0 : index
    %167 = vector.load %arg12[%c0_67, %c0_68] : memref<1x128xf32, #tpu.memory_space<vmem>>, vector<1x128xf32>
    %168 = vector.broadcast %19 : vector<16x1xf32> to vector<16x128xf32>
    %169 = arith.mulf %165, %168 : vector<16x128xf32>
    %cst_69 = arith.constant dense<0.000000e+00> : vector<128xf32>
    %170 = vector.multi_reduction <add>, %169, %cst_69 [0] : vector<16x128xf32> to vector<128xf32>
    %171 = vector.shape_cast %170 : vector<128xf32> to vector<1x128xf32>
    %cst_70 = arith.constant 5.000000e-01 : f32
    %172 = vector.broadcast %cst_70 : f32 to vector<1x128xf32>
    %173 = arith.mulf %171, %172 : vector<1x128xf32>
    %174 = arith.mulf %169, %165 : vector<16x128xf32>
    %cst_71 = arith.constant dense<0.000000e+00> : vector<128xf32>
    %175 = vector.multi_reduction <add>, %174, %cst_71 [0] : vector<16x128xf32> to vector<128xf32>
    %176 = vector.shape_cast %175 : vector<128xf32> to vector<1x128xf32>
    %cst_72 = arith.constant 5.000000e-01 : f32
    %177 = vector.broadcast %cst_72 : f32 to vector<1x128xf32>
    %178 = arith.mulf %176, %177 : vector<1x128xf32>
    %179 = arith.mulf %173, %173 : vector<1x128xf32>
    %180 = arith.subf %178, %179 : vector<1x128xf32>
    %cst_73 = arith.constant 0.000000e+00 : f32
    %181 = vector.broadcast %cst_73 : f32 to vector<1x128xf32>
    %182 = arith.maximumf %180, %181 : vector<1x128xf32>
    %cst_74 = arith.constant 9.99999974E-6 : f32
    %183 = vector.broadcast %cst_74 : f32 to vector<1x128xf32>
    %184 = arith.addf %182, %183 : vector<1x128xf32>
    %185 = math.rsqrt %184 : vector<1x128xf32>
    %186 = arith.mulf %166, %185 : vector<1x128xf32>
    %187 = arith.mulf %173, %186 : vector<1x128xf32>
    %188 = arith.subf %167, %187 : vector<1x128xf32>
    %189 = vector.broadcast %26 : vector<16x1xf32> to vector<16x128xf32>
    %190 = arith.mulf %165, %189 : vector<16x128xf32>
    %cst_75 = arith.constant dense<0.000000e+00> : vector<128xf32>
    %191 = vector.multi_reduction <add>, %190, %cst_75 [0] : vector<16x128xf32> to vector<128xf32>
    %192 = vector.shape_cast %191 : vector<128xf32> to vector<1x128xf32>
    %cst_76 = arith.constant 5.000000e-01 : f32
    %193 = vector.broadcast %cst_76 : f32 to vector<1x128xf32>
    %194 = arith.mulf %192, %193 : vector<1x128xf32>
    %195 = arith.mulf %190, %165 : vector<16x128xf32>
    %cst_77 = arith.constant dense<0.000000e+00> : vector<128xf32>
    %196 = vector.multi_reduction <add>, %195, %cst_77 [0] : vector<16x128xf32> to vector<128xf32>
    %197 = vector.shape_cast %196 : vector<128xf32> to vector<1x128xf32>
    %cst_78 = arith.constant 5.000000e-01 : f32
    %198 = vector.broadcast %cst_78 : f32 to vector<1x128xf32>
    %199 = arith.mulf %197, %198 : vector<1x128xf32>
    %200 = arith.mulf %194, %194 : vector<1x128xf32>
    %201 = arith.subf %199, %200 : vector<1x128xf32>
    %cst_79 = arith.constant 0.000000e+00 : f32
    %202 = vector.broadcast %cst_79 : f32 to vector<1x128xf32>
    %203 = arith.maximumf %201, %202 : vector<1x128xf32>
    %cst_80 = arith.constant 9.99999974E-6 : f32
    %204 = vector.broadcast %cst_80 : f32 to vector<1x128xf32>
    %205 = arith.addf %203, %204 : vector<1x128xf32>
    %206 = math.rsqrt %205 : vector<1x128xf32>
    %207 = arith.mulf %166, %206 : vector<1x128xf32>
    %208 = arith.mulf %194, %207 : vector<1x128xf32>
    %209 = arith.subf %167, %208 : vector<1x128xf32>
    %210 = vector.shape_cast %15 : vector<16x1xi1> to vector<16x1xi1>
    %211 = vector.broadcast %210 : vector<16x1xi1> to vector<16x128xi1>
    %212 = vector.shape_cast %186 : vector<1x128xf32> to vector<1x128xf32>
    %213 = vector.broadcast %212 : vector<1x128xf32> to vector<16x128xf32>
    %214 = vector.shape_cast %207 : vector<1x128xf32> to vector<1x128xf32>
    %215 = vector.broadcast %214 : vector<1x128xf32> to vector<16x128xf32>
    %216 = arith.select %211, %213, %215 : vector<16x128xi1>, vector<16x128xf32>
    %217 = vector.shape_cast %15 : vector<16x1xi1> to vector<16x1xi1>
    %218 = vector.broadcast %217 : vector<16x1xi1> to vector<16x128xi1>
    %219 = vector.shape_cast %188 : vector<1x128xf32> to vector<1x128xf32>
    %220 = vector.broadcast %219 : vector<1x128xf32> to vector<16x128xf32>
    %221 = vector.shape_cast %209 : vector<1x128xf32> to vector<1x128xf32>
    %222 = vector.broadcast %221 : vector<1x128xf32> to vector<16x128xf32>
    %223 = arith.select %218, %220, %222 : vector<16x128xi1>, vector<16x128xf32>
    %224 = arith.mulf %165, %216 : vector<16x128xf32>
    %225 = arith.addf %224, %223 : vector<16x128xf32>
    %c0_81 = arith.constant 0 : index
    %c0_82 = arith.constant 0 : index
    %226 = vector.load %arg19[%c0_81, %c0_82] : memref<16x128xf32, #tpu.memory_space<vmem>>, vector<16x128xf32>
    tpu.vector_store %arg19[%c0_81, %c0_82], %225 {strides = array<i32>} : memref<16x128xf32, #tpu.memory_space<vmem>>, vector<16x128xf32>,
    %227 = arith.truncf %225 : vector<16x128xf32> to vector<16x128xbf16>
    %c0_83 = arith.constant 0 : index
    %c0_84 = arith.constant 0 : index
    %228 = vector.load %arg13[%c0_83, %c0_84] : memref<128x128xbf16, #tpu.memory_space<vmem>>, vector<128x128xbf16>
    %cst_85 = arith.constant dense<0.000000e+00> : vector<16x128xf32>
    %229 = tpu.matmul %227, %228, %cst_85 {dimension_numbers = #tpu.dot_dimension_numbers<[1], [0], [0], [1], [0, 0, 1, 1], [], []>} : vector<16x128xbf16>, vector<128x128xbf16>, vector<16x128xf32> -> vector<16x128xf32>
    %c0_86 = arith.constant 0 : index
    %c0_87 = arith.constant 0 : index
    %230 = vector.load %arg14[%c0_86, %c0_87] : memref<1x128xf32, #tpu.memory_space<vmem>>, vector<1x128xf32>
    %c0_88 = arith.constant 0 : index
    %c0_89 = arith.constant 0 : index
    %231 = vector.load %arg15[%c0_88, %c0_89] : memref<1x128xf32, #tpu.memory_space<vmem>>, vector<1x128xf32>
    %232 = vector.broadcast %19 : vector<16x1xf32> to vector<16x128xf32>
    %233 = arith.mulf %229, %232 : vector<16x128xf32>
    %cst_90 = arith.constant dense<0.000000e+00> : vector<128xf32>
    %234 = vector.multi_reduction <add>, %233, %cst_90 [0] : vector<16x128xf32> to vector<128xf32>
    %235 = vector.shape_cast %234 : vector<128xf32> to vector<1x128xf32>
    %cst_91 = arith.constant 5.000000e-01 : f32
    %236 = vector.broadcast %cst_91 : f32 to vector<1x128xf32>
    %237 = arith.mulf %235, %236 : vector<1x128xf32>
    %238 = arith.mulf %233, %229 : vector<16x128xf32>
    %cst_92 = arith.constant dense<0.000000e+00> : vector<128xf32>
    %239 = vector.multi_reduction <add>, %238, %cst_92 [0] : vector<16x128xf32> to vector<128xf32>
    %240 = vector.shape_cast %239 : vector<128xf32> to vector<1x128xf32>
    %cst_93 = arith.constant 5.000000e-01 : f32
    %241 = vector.broadcast %cst_93 : f32 to vector<1x128xf32>
    %242 = arith.mulf %240, %241 : vector<1x128xf32>
    %243 = arith.mulf %237, %237 : vector<1x128xf32>
    %244 = arith.subf %242, %243 : vector<1x128xf32>
    %cst_94 = arith.constant 0.000000e+00 : f32
    %245 = vector.broadcast %cst_94 : f32 to vector<1x128xf32>
    %246 = arith.maximumf %244, %245 : vector<1x128xf32>
    %cst_95 = arith.constant 9.99999974E-6 : f32
    %247 = vector.broadcast %cst_95 : f32 to vector<1x128xf32>
    %248 = arith.addf %246, %247 : vector<1x128xf32>
    %249 = math.rsqrt %248 : vector<1x128xf32>
    %250 = arith.mulf %230, %249 : vector<1x128xf32>
    %251 = arith.mulf %237, %250 : vector<1x128xf32>
    %252 = arith.subf %231, %251 : vector<1x128xf32>
    %253 = vector.broadcast %26 : vector<16x1xf32> to vector<16x128xf32>
    %254 = arith.mulf %229, %253 : vector<16x128xf32>
    %cst_96 = arith.constant dense<0.000000e+00> : vector<128xf32>
    %255 = vector.multi_reduction <add>, %254, %cst_96 [0] : vector<16x128xf32> to vector<128xf32>
    %256 = vector.shape_cast %255 : vector<128xf32> to vector<1x128xf32>
    %cst_97 = arith.constant 5.000000e-01 : f32
    %257 = vector.broadcast %cst_97 : f32 to vector<1x128xf32>
    %258 = arith.mulf %256, %257 : vector<1x128xf32>
    %259 = arith.mulf %254, %229 : vector<16x128xf32>
    %cst_98 = arith.constant dense<0.000000e+00> : vector<128xf32>
    %260 = vector.multi_reduction <add>, %259, %cst_98 [0] : vector<16x128xf32> to vector<128xf32>
    %261 = vector.shape_cast %260 : vector<128xf32> to vector<1x128xf32>
    %cst_99 = arith.constant 5.000000e-01 : f32
    %262 = vector.broadcast %cst_99 : f32 to vector<1x128xf32>
    %263 = arith.mulf %261, %262 : vector<1x128xf32>
    %264 = arith.mulf %258, %258 : vector<1x128xf32>
    %265 = arith.subf %263, %264 : vector<1x128xf32>
    %cst_100 = arith.constant 0.000000e+00 : f32
    %266 = vector.broadcast %cst_100 : f32 to vector<1x128xf32>
    %267 = arith.maximumf %265, %266 : vector<1x128xf32>
    %cst_101 = arith.constant 9.99999974E-6 : f32
    %268 = vector.broadcast %cst_101 : f32 to vector<1x128xf32>
    %269 = arith.addf %267, %268 : vector<1x128xf32>
    %270 = math.rsqrt %269 : vector<1x128xf32>
    %271 = arith.mulf %230, %270 : vector<1x128xf32>
    %272 = arith.mulf %258, %271 : vector<1x128xf32>
    %273 = arith.subf %231, %272 : vector<1x128xf32>
    %274 = vector.shape_cast %15 : vector<16x1xi1> to vector<16x1xi1>
    %275 = vector.broadcast %274 : vector<16x1xi1> to vector<16x128xi1>
    %276 = vector.shape_cast %250 : vector<1x128xf32> to vector<1x128xf32>
    %277 = vector.broadcast %276 : vector<1x128xf32> to vector<16x128xf32>
    %278 = vector.shape_cast %271 : vector<1x128xf32> to vector<1x128xf32>
    %279 = vector.broadcast %278 : vector<1x128xf32> to vector<16x128xf32>
    %280 = arith.select %275, %277, %279 : vector<16x128xi1>, vector<16x128xf32>
    %281 = vector.shape_cast %15 : vector<16x1xi1> to vector<16x1xi1>
    %282 = vector.broadcast %281 : vector<16x1xi1> to vector<16x128xi1>
    %283 = vector.shape_cast %252 : vector<1x128xf32> to vector<1x128xf32>
    %284 = vector.broadcast %283 : vector<1x128xf32> to vector<16x128xf32>
    %285 = vector.shape_cast %273 : vector<1x128xf32> to vector<1x128xf32>
    %286 = vector.broadcast %285 : vector<1x128xf32> to vector<16x128xf32>
    %287 = arith.select %282, %284, %286 : vector<16x128xi1>, vector<16x128xf32>
    %288 = arith.mulf %229, %280 : vector<16x128xf32>
    %289 = arith.addf %288, %287 : vector<16x128xf32>
    %cst_102 = arith.constant 0.000000e+00 : f32
    %290 = vector.broadcast %cst_102 : f32 to vector<16x128xf32>
    %291 = arith.maximumf %289, %290 : vector<16x128xf32>
    %292 = arith.truncf %291 : vector<16x128xf32> to vector<16x128xbf16>
    %c0_103 = arith.constant 0 : index
    %c0_104 = arith.constant 0 : index
    %293 = vector.load %arg16[%c0_103, %c0_104] : memref<128x128xbf16, #tpu.memory_space<vmem>>, vector<128x128xbf16>
    %cst_105 = arith.constant dense<0.000000e+00> : vector<16x128xf32>
    %294 = tpu.matmul %292, %293, %cst_105 {dimension_numbers = #tpu.dot_dimension_numbers<[1], [0], [0], [1], [0, 0, 1, 1], [], []>} : vector<16x128xbf16>, vector<128x128xbf16>, vector<16x128xf32> -> vector<16x128xf32>
    %c0_106 = arith.constant 0 : index
    %c0_107 = arith.constant 0 : index
    %295 = vector.load %arg17[%c0_106, %c0_107] : memref<1x128xf32, #tpu.memory_space<vmem>>, vector<1x128xf32>
    %296 = vector.broadcast %295 : vector<1x128xf32> to vector<16x128xf32>
    %297 = arith.addf %294, %296 : vector<16x128xf32>
    %c0_108 = arith.constant 0 : index
    %c0_109 = arith.constant 0 : index
    %298 = vector.load %arg20[%c0_108, %c0_109] : memref<16x128xf32, #tpu.memory_space<vmem>>, vector<16x128xf32>
    tpu.vector_store %arg20[%c0_108, %c0_109], %297 {strides = array<i32>} : memref<16x128xf32, #tpu.memory_space<vmem>>, vector<16x128xf32>,
    return
  }
}

</mosaic_0001>

<llo_original>
// kernel: fwd.1
$region0: #{fwd.1}
  #allocation0 [shape = 'u32[]', space=smem, size = 0x4, offset = 0x4, fixed_abs, tag = 'smem constant byte address 0x4 - core index']
  #allocation1 [shape = 'u32[144,128]{1,0:T(1,128)}', space=vmem, size = 0x12000, scoped, tag = 'internal scratch']
  #allocation2 [shape = 'f32[2,8,1024]{2,1,0:T(8,128)}', space=vmem, size = 0x10000, scoped, tag = 'scratch operand']
  %s0 = inlined_call_operand.vmem [shape: f32[2,1024], index: 0, kind: input, shape index: {}]
  %s1 = inlined_call_operand.vmem [shape: f32[2,1024], index: 1, kind: input, shape index: {}]
  %s2 = inlined_call_operand.hbm [shape: bf16[1024,128], index: 2, kind: input, shape index: {}]
  %s3 = inlined_call_operand.vmem [shape: f32[1,128], index: 3, kind: input, shape index: {}]
  %s4 = inlined_call_operand.vmem [shape: bf16[128,128], index: 4, kind: input, shape index: {}]
  %s5 = inlined_call_operand.vmem [shape: f32[1,128], index: 5, kind: input, shape index: {}]
  %s6 = inlined_call_operand.vmem [shape: f32[1,128], index: 6, kind: input, shape index: {}]
  %s7 = inlined_call_operand.vmem [shape: bf16[128,128], index: 7, kind: input, shape index: {}]
  %s8 = inlined_call_operand.vmem [shape: f32[1,128], index: 8, kind: input, shape index: {}]
  %s9 = inlined_call_operand.vmem [shape: f32[1,128], index: 9, kind: input, shape index: {}]
  %s10 = inlined_call_operand.vmem [shape: bf16[128,128], index: 10, kind: input, shape index: {}]
  %s11 = inlined_call_operand.vmem [shape: f32[1,128], index: 11, kind: input, shape index: {}]
  %s12 = inlined_call_operand.vmem [shape: f32[1,128], index: 12, kind: input, shape index: {}]
  %s13 = inlined_call_operand.hbm [shape: bf16[128,128], index: 13, kind: input, shape index: {}]
  %s14 = inlined_call_operand.vmem [shape: f32[1,128], index: 14, kind: input, shape index: {}]
  %s15 = inlined_call_operand.vmem [shape: f32[1,128], index: 15, kind: input, shape index: {}]
  %s16 = inlined_call_operand.hbm [shape: bf16[128,128], index: 16, kind: input, shape index: {}]
  %s17 = inlined_call_operand.vmem [shape: f32[1,128], index: 17, kind: input, shape index: {}]
  %s18 = inlined_call_operand.vmem [shape: f32[16,128], index: 18, kind: output, shape index: {0}]
  %s19 = inlined_call_operand.vmem [shape: f32[16,128], index: 19, kind: output, shape index: {1}]
  %s20 = inlined_call_operand.vmem [shape: f32[16,128], index: 20, kind: output, shape index: {2}]
  %21 = xla_tuple %s18, %s19, %s20
  %s22 = sld [smem:[#allocation0]]
  $region110: #{fwd.1} parent=0
    _
  %s24 = ssub.s32 1, %s22
  %s25 = scalar_select 0, %s24, %s22
  $region1: #{fwd.1} parent=0
    #allocation3 [shape = 'u8[262144]{0}', space=vmem, size = 0x40000, scoped, tag = 'input window, operand 2, single buffered']
    #allocation4 [shape = 's32[1]{0}', space=sflag, size = 0x4, scoped, tag = 'scoped memory for fwd.1']
    #allocation5 [shape = 'u8[32768]{0}', space=vmem, size = 0x8000, scoped, tag = 'input window, operand 13, single buffered']
    #allocation6 [shape = 's32[1]{0}', space=sflag, size = 0x4, scoped, tag = 'scoped memory for fwd.1']
    #allocation7 [shape = 'u8[32768]{0}', space=vmem, size = 0x8000, scoped, tag = 'input window, operand 16, single buffered']
    %26 = vsyncpa [#allocation4], 0
    %27 = vsyncpa [#allocation6], 0
    // Predicated region
    $region2: #{fwd.1} parent=1 // pred_check
      _
    $region3: #{fwd.1} parent=1 // pred_check_branch
      %29 = sbr.rel (0) target = $region5
    $region4: #{fwd.1} parent=1 // pred_region
      _
    $region5: #{fwd.1} parent=1 // pred_fallthru
      _
    // Predicated region
    $region6: #{fwd.1} parent=1 // pred_check
      _
    $region7: #{fwd.1} parent=1 // pred_check_branch
      %31 = sbr.rel (0) target = $region9
    $region8: #{fwd.1} parent=1 // pred_region
      _
    $region9: #{fwd.1} parent=1 // pred_fallthru
      _
    // Predicated region
    $region10: #{fwd.1} parent=1 // pred_check
      _
    $region11: #{fwd.1} parent=1 // pred_check_branch
      %33 = sbr.rel (0) target = $region13
    $region12: #{fwd.1} parent=1 // pred_region
      %s35 = ssub.s32 8192, 8192
      %36 = vsyncadd [#allocation4], %s35
      %s37 = sshll.u32 [#allocation3], 4
      %s38 = int_to_ptr.vmem [resolvable:$true] %s37
      %43 = dma.hbm_to_vmem [thread:$0]  %s2, 8192, %s38, [#allocation4], 64, 64, 4
    $region13: #{fwd.1} parent=1 // pred_fallthru
      _
    // Predicated region
    $region14: #{fwd.1} parent=1 // pred_check
      _
    $region15: #{fwd.1} parent=1 // pred_check_branch
      %45 = sbr.rel (0) target = $region17
    $region16: #{fwd.1} parent=1 // pred_region
      _
    $region17: #{fwd.1} parent=1 // pred_fallthru
      _
    // Predicated region
    $region18: #{fwd.1} parent=1 // pred_check
      _
    $region19: #{fwd.1} parent=1 // pred_check_branch
      %47 = sbr.rel (0) target = $region21
    $region20: #{fwd.1} parent=1 // pred_region
      _
    $region21: #{fwd.1} parent=1 // pred_fallthru
      _
    // Predicated region
    $region22: #{fwd.1} parent=1 // pred_check
      _
    $region23: #{fwd.1} parent=1 // pred_check_branch
      %49 = sbr.rel (0) target = $region25
    $region24: #{fwd.1} parent=1 // pred_region
      _
    $region25: #{fwd.1} parent=1 // pred_fallthru
      _
    // Predicated region
    $region26: #{fwd.1} parent=1 // pred_check
      _
    $region27: #{fwd.1} parent=1 // pred_check_branch
      %51 = sbr.rel (0) target = $region29
    $region28: #{fwd.1} parent=1 // pred_region
      _
    $region29: #{fwd.1} parent=1 // pred_fallthru
      _
    // Predicated region
    $region30: #{fwd.1} parent=1 // pred_check
      _
    $region31: #{fwd.1} parent=1 // pred_check_branch
      %53 = sbr.rel (0) target = $region33
    $region32: #{fwd.1} parent=1 // pred_region
      _
    $region33: #{fwd.1} parent=1 // pred_fallthru
      _
    // Predicated region
    $region34: #{fwd.1} parent=1 // pred_check
      _
    $region35: #{fwd.1} parent=1 // pred_check_branch
      %55 = sbr.rel (0) target = $region37
    $region36: #{fwd.1} parent=1 // pred_region
      _
    $region37: #{fwd.1} parent=1 // pred_fallthru
      _
    // Predicated region
    $region38: #{fwd.1} parent=1 // pred_check
      _
    $region39: #{fwd.1} parent=1 // pred_check_branch
      %57 = sbr.rel (0) target = $region41
    $region40: #{fwd.1} parent=1 // pred_region
      _
    $region41: #{fwd.1} parent=1 // pred_fallthru
      _
    // Predicated region
    $region42: #{fwd.1} parent=1 // pred_check
      _
    $region43: #{fwd.1} parent=1 // pred_check_branch
      %59 = sbr.rel (0) target = $region45
    $region44: #{fwd.1} parent=1 // pred_region
      _
    $region45: #{fwd.1} parent=1 // pred_fallthru
      _
    // Predicated region
    $region46: #{fwd.1} parent=1 // pred_check
      _
    $region47: #{fwd.1} parent=1 // pred_check_branch
      %61 = sbr.rel (0) target = $region49
    $region48: #{fwd.1} parent=1 // pred_region
      _
    $region49: #{fwd.1} parent=1 // pred_fallthru
      _
    // Predicated region
    $region50: #{fwd.1} parent=1 // pred_check
      _
    $region51: #{fwd.1} parent=1 // pred_check_branch
      %63 = sbr.rel (0) target = $region53
    $region52: #{fwd.1} parent=1 // pred_region
      _
    $region53: #{fwd.1} parent=1 // pred_fallthru
      _
    // Predicated region
    $region54: #{fwd.1} parent=1 // pred_check
      _
    $region55: #{fwd.1} parent=1 // pred_check_branch
      %65 = sbr.rel (0) target = $region57
    $region56: #{fwd.1} parent=1 // pred_region
      %s67 = ssub.s32 1024, 1024
      %68 = vsyncadd [#allocation6], %s67
      %s69 = sshll.u32 [#allocation5], 4
      %s70 = int_to_ptr.vmem [resolvable:$true] %s69
      %75 = dma.hbm_to_vmem [thread:$0]  %s13, 1024, %s70, [#allocation6], 64, 64, 4
    $region57: #{fwd.1} parent=1 // pred_fallthru
      _
    // Predicated region
    $region58: #{fwd.1} parent=1 // pred_check
      _
    $region59: #{fwd.1} parent=1 // pred_check_branch
      %77 = sbr.rel (0) target = $region61
    $region60: #{fwd.1} parent=1 // pred_region
      _
    $region61: #{fwd.1} parent=1 // pred_fallthru
      _
    // Predicated region
    $region62: #{fwd.1} parent=1 // pred_check
      _
    $region63: #{fwd.1} parent=1 // pred_check_branch
      %79 = sbr.rel (0) target = $region65
    $region64: #{fwd.1} parent=1 // pred_region
      _
    $region65: #{fwd.1} parent=1 // pred_fallthru
      _
    // Predicated region
    $region66: #{fwd.1} parent=1 // pred_check
      _
    $region67: #{fwd.1} parent=1 // pred_check_branch
      %81 = sbr.rel (0) target = $region69
    $region68: #{fwd.1} parent=1 // pred_region
      %s83 = ssub.s32 1024, 1024
      %84 = vsyncadd [#allocation6], %s83
      %s85 = sshll.u32 [#allocation7], 4
      %s86 = int_to_ptr.vmem [resolvable:$true] %s85
      %91 = dma.hbm_to_vmem [thread:$0]  %s16, 1024, %s86, [#allocation6], 64, 64, 4
    $region69: #{fwd.1} parent=1 // pred_fallthru
      _
    // Predicated region
    $region70: #{fwd.1} parent=1 // pred_check
      _
    $region71: #{fwd.1} parent=1 // pred_check_branch
      %93 = sbr.rel (0) target = $region73
    $region72: #{fwd.1} parent=1 // pred_region
      _
    $region73: #{fwd.1} parent=1 // pred_fallthru
      _
    // Predicated region
    $region74: #{fwd.1} parent=1 // pred_check
      _
    $region75: #{fwd.1} parent=1 // pred_check_branch
      %95 = sbr.rel (0) target = $region77
    $region76: #{fwd.1} parent=1 // pred_region
      %96 = dma.done [#allocation4], 8192
    $region77: #{fwd.1} parent=1 // pred_fallthru
      _
    // Predicated region
    $region78: #{fwd.1} parent=1 // pred_check
      _
    $region79: #{fwd.1} parent=1 // pred_check_branch
      %98 = sbr.rel (0) target = $region81
    $region80: #{fwd.1} parent=1 // pred_region
      %99 = dma.done [#allocation6], 1024
    $region81: #{fwd.1} parent=1 // pred_fallthru
      _
    // Predicated region
    $region82: #{fwd.1} parent=1 // pred_check
      _
    $region83: #{fwd.1} parent=1 // pred_check_branch
      %101 = sbr.rel (0) target = $region85
    $region84: #{fwd.1} parent=1 // pred_region
      %102 = dma.done [#allocation6], 1024
    $region85: #{fwd.1} parent=1 // pred_fallthru
      _
    %104 = vst [vmem:[#allocation2] sm:$0xff] 0.0
    %105 = vst [vmem:[#allocation2 + $0x8] sm:$0xff] 0.0
    %106 = vst [vmem:[#allocation2 + $0x10] sm:$0xff] 0.0
    %107 = vst [vmem:[#allocation2 + $0x18] sm:$0xff] 0.0
    %108 = vst [vmem:[#allocation2 + $0x20] sm:$0xff] 0.0
    %109 = vst [vmem:[#allocation2 + $0x28] sm:$0xff] 0.0
    %110 = vst [vmem:[#allocation2 + $0x30] sm:$0xff] 0.0
    %111 = vst [vmem:[#allocation2 + $0x38] sm:$0xff] 0.0
    %112 = vst [vmem:[#allocation2 + $0x40] sm:$0xff] 0.0
    %113 = vst [vmem:[#allocation2 + $0x48] sm:$0xff] 0.0
    %114 = vst [vmem:[#allocation2 + $0x50] sm:$0xff] 0.0
    %115 = vst [vmem:[#allocation2 + $0x58] sm:$0xff] 0.0
    %116 = vst [vmem:[#allocation2 + $0x60] sm:$0xff] 0.0
    %117 = vst [vmem:[#allocation2 + $0x68] sm:$0xff] 0.0
    %118 = vst [vmem:[#allocation2 + $0x70] sm:$0xff] 0.0
    %119 = vst [vmem:[#allocation2 + $0x78] sm:$0xff] 0.0
    %v120 = vld [vmem:[%s0] sm:$0xff]
    %v121 = vld [vmem:[%s0 + $0x8] sm:$0xff]
    %v124 = vcombine.high %v120, %v120
    %v126 = vunpack.c.l.s4 1983009808
    %v127 = vunpack.c.0.s8 %v126
    %v128 = vlaneseq
    %v129 = vshrl.u32 %v128, 7
    %v130 = vsub.s32 %v127, %v129
    %v131 = vrot.slane %v120, %v130
    %v133 = vunpack.c.l.s4 1983009808
    %v134 = vunpack.c.0.s8 %v133
    %v135 = vlaneseq
    %v136 = vshrl.u32 %v135, 7
    %v137 = vsub.s32 %v134, %v136
    %v138 = vrot.slane %v124, %v137
    %v139 = vcombine.high %v131, %v131
    %v140 = vcombine.high %v138, %v138
    %v141 = vcombine.high %v121, %v121
    %v143 = vunpack.c.l.s4 1983009808
    %v144 = vunpack.c.0.s8 %v143
    %v145 = vlaneseq
    %v146 = vshrl.u32 %v145, 7
    %v147 = vsub.s32 %v144, %v146
    %v148 = vrot.slane %v121, %v147
    %v150 = vunpack.c.l.s4 1983009808
    %v151 = vunpack.c.0.s8 %v150
    %v152 = vlaneseq
    %v153 = vshrl.u32 %v152, 7
    %v154 = vsub.s32 %v151, %v153
    %v155 = vrot.slane %v141, %v154
    %v156 = vcombine.high %v148, %v148
    %v157 = vcombine.high %v155, %v155
    %166 = vst [vmem:[#allocation2] sm:$0x3] %v131
    %167 = vst [vmem:[#allocation2 + $0x8] sm:$0x3] %v139
    %168 = vst [vmem:[#allocation2 + $0x10] sm:$0x3] %v138
    %169 = vst [vmem:[#allocation2 + $0x18] sm:$0x3] %v140
    %170 = vst [vmem:[#allocation2 + $0x20] sm:$0x3] %v148
    %171 = vst [vmem:[#allocation2 + $0x28] sm:$0x3] %v156
    %172 = vst [vmem:[#allocation2 + $0x30] sm:$0x3] %v155
    %173 = vst [vmem:[#allocation2 + $0x38] sm:$0x3] %v157
    %v174 = vld [vmem:[%s1] sm:$0xff]
    %v175 = vld [vmem:[%s1 + $0x8] sm:$0xff]
    %v178 = vcombine.high %v174, %v174
    %v180 = vunpack.c.l.s4 1983009808
    %v181 = vunpack.c.0.s8 %v180
    %v182 = vlaneseq
    %v183 = vshrl.u32 %v182, 7
    %v184 = vsub.s32 %v181, %v183
    %v185 = vrot.slane %v174, %v184
    %v187 = vunpack.c.l.s4 1983009808
    %v188 = vunpack.c.0.s8 %v187
    %v189 = vlaneseq
    %v190 = vshrl.u32 %v189, 7
    %v191 = vsub.s32 %v188, %v190
    %v192 = vrot.slane %v178, %v191
    %v193 = vcombine.high %v185, %v185
    %v194 = vcombine.high %v192, %v192
    %v195 = vcombine.high %v175, %v175
    %v197 = vunpack.c.l.s4 1983009808
    %v198 = vunpack.c.0.s8 %v197
    %v199 = vlaneseq
    %v200 = vshrl.u32 %v199, 7
    %v201 = vsub.s32 %v198, %v200
    %v202 = vrot.slane %v175, %v201
    %v204 = vunpack.c.l.s4 1983009808
    %v205 = vunpack.c.0.s8 %v204
    %v206 = vlaneseq
    %v207 = vshrl.u32 %v206, 7
    %v208 = vsub.s32 %v205, %v207
    %v209 = vrot.slane %v195, %v208
    %v210 = vcombine.high %v202, %v202
    %v211 = vcombine.high %v209, %v209
    %s220 = scalar_lea.vmem [#allocation2], 64
    %221 = vst [vmem:[%s220] sm:$0x3] %v185
    %222 = vst [vmem:[%s220 + $0x8] sm:$0x3] %v193
    %223 = vst [vmem:[%s220 + $0x10] sm:$0x3] %v192
    %224 = vst [vmem:[%s220 + $0x18] sm:$0x3] %v194
    %225 = vst [vmem:[%s220 + $0x20] sm:$0x3] %v202
    %226 = vst [vmem:[%s220 + $0x28] sm:$0x3] %v210
    %227 = vst [vmem:[%s220 + $0x30] sm:$0x3] %v209
    %228 = vst [vmem:[%s220 + $0x38] sm:$0x3] %v211
    %v229 = vld [vmem:[#allocation2] sm:$0xff]
    %v230 = vld [vmem:[#allocation2 + $0x8] sm:$0xff]
    %v231 = vld [vmem:[#allocation2 + $0x10] sm:$0xff]
    %v232 = vld [vmem:[#allocation2 + $0x18] sm:$0xff]
    %v233 = vld [vmem:[#allocation2 + $0x20] sm:$0xff]
    %v234 = vld [vmem:[#allocation2 + $0x28] sm:$0xff]
    %v235 = vld [vmem:[#allocation2 + $0x30] sm:$0xff]
    %v236 = vld [vmem:[#allocation2 + $0x38] sm:$0xff]
    %v237 = vld [vmem:[#allocation2 + $0x40] sm:$0xff]
    %v238 = vld [vmem:[#allocation2 + $0x48] sm:$0xff]
    %v239 = vld [vmem:[#allocation2 + $0x50] sm:$0xff]
    %v240 = vld [vmem:[#allocation2 + $0x58] sm:$0xff]
    %v241 = vld [vmem:[#allocation2 + $0x60] sm:$0xff]
    %v242 = vld [vmem:[#allocation2 + $0x68] sm:$0xff]
    %v243 = vld [vmem:[#allocation2 + $0x70] sm:$0xff]
    %v244 = vld [vmem:[#allocation2 + $0x78] sm:$0xff]
    %v245 = vpack.c.bf16 %v237, %v229
    %v246 = vpack.c.bf16 %v238, %v230
    %v247 = vpack.c.bf16 %v239, %v231
    %v248 = vpack.c.bf16 %v240, %v232
    %v249 = vpack.c.bf16 %v241, %v233
    %v250 = vpack.c.bf16 %v242, %v234
    %v251 = vpack.c.bf16 %v243, %v235
    %v252 = vpack.c.bf16 %v244, %v236
    %v253 = vlaneseq
    %v254 = vshrl.u32 %v253, 7
    %v255 = vadd.s32 %v254, 8
    %vm256 = vcmp.lt.s32.totalorder %v254, 8
    %vm257 = vcmp.lt.s32.totalorder %v255, 8
    %vm258 = vcmp.lt.s32.totalorder %v254, 2
    %vm259 = vcmp.lt.s32.totalorder %v255, 2
    %v260 = vsel %vm258, 1, 0
    %v261 = vsel %vm259, 1, 0
    %v262 = vcvt.s32.f32 %v260
    %v263 = vcvt.s32.f32 %v261
    %vm264 = vcmp.ge.s32.totalorder %v254, 8
    %vm265 = vcmp.ge.s32.totalorder %v255, 8
    %vm266 = vcmp.lt.s32.totalorder %v254, 10
    %vm267 = vcmp.lt.s32.totalorder %v255, 10
    %vm268 = vmand %vm264, %vm266
    %vm269 = vmand %vm265, %vm267
    %v270 = vsel %vm268, 1, 0
    %v271 = vsel %vm269, 1, 0
    %v272 = vcvt.s32.f32 %v270
    %v273 = vcvt.s32.f32 %v271
    %v274 = vld [vmem:[#allocation3] sm:$0xf]
    %v275 = vld [vmem:[#allocation3 + $0x4] sm:$0xf]
    %v276 = vld [vmem:[#allocation3 + $0x8] sm:$0xf]
    %v277 = vld [vmem:[#allocation3 + $0xc] sm:$0xf]
    %v278 = vld [vmem:[#allocation3 + $0x10] sm:$0xf]
    %v279 = vld [vmem:[#allocation3 + $0x14] sm:$0xf]
    %v280 = vld [vmem:[#allocation3 + $0x18] sm:$0xf]
    %v281 = vld [vmem:[#allocation3 + $0x1c] sm:$0xf]
    %v282 = vld [vmem:[#allocation3 + $0x20] sm:$0xf]
    %v283 = vld [vmem:[#allocation3 + $0x24] sm:$0xf]
    %v284 = vld [vmem:[#allocation3 + $0x28] sm:$0xf]
    %v285 = vld [vmem:[#allocation3 + $0x2c] sm:$0xf]
    %v286 = vld [vmem:[#allocation3 + $0x30] sm:$0xf]
    %v287 = vld [vmem:[#allocation3 + $0x34] sm:$0xf]
    %v288 = vld [vmem:[#allocation3 + $0x38] sm:$0xf]
    %v289 = vld [vmem:[#allocation3 + $0x3c] sm:$0xf]
    %v290 = vld [vmem:[#allocation3 + $0x40] sm:$0xf]
    %v291 = vld [vmem:[#allocation3 + $0x44] sm:$0xf]
    %v292 = vld [vmem:[#allocation3 + $0x48] sm:$0xf]
    %v293 = vld [vmem:[#allocation3 + $0x4c] sm:$0xf]
    %v294 = vld [vmem:[#allocation3 + $0x50] sm:$0xf]
    %v295 = vld [vmem:[#allocation3 + $0x54] sm:$0xf]
    %v296 = vld [vmem:[#allocation3 + $0x58] sm:$0xf]
    %v297 = vld [vmem:[#allocation3 + $0x5c] sm:$0xf]
    %v298 = vld [vmem:[#allocation3 + $0x60] sm:$0xf]
    %v299 = vld [vmem:[#allocation3 + $0x64] sm:$0xf]
    %v300 = vld [vmem:[#allocation3 + $0x68] sm:$0xf]
    %v301 = vld [vmem:[#allocation3 + $0x6c] sm:$0xf]
    %v302 = vld [vmem:[#allocation3 + $0x70] sm:$0xf]
    %v303 = vld [vmem:[#allocation3 + $0x74] sm:$0xf]
    %v304 = vld [vmem:[#allocation3 + $0x78] sm:$0xf]
    %v305 = vld [vmem:[#allocation3 + $0x7c] sm:$0xf]
    %v306 = vld [vmem:[#allocation3 + $0x80] sm:$0xf]
    %v307 = vld [vmem:[#allocation3 + $0x84] sm:$0xf]
    %v308 = vld [vmem:[#allocation3 + $0x88] sm:$0xf]
    %v309 = vld [vmem:[#allocation3 + $0x8c] sm:$0xf]
    %v310 = vld [vmem:[#allocation3 + $0x90] sm:$0xf]
    %v311 = vld [vmem:[#allocation3 + $0x94] sm:$0xf]
    %v312 = vld [vmem:[#allocation3 + $0x98] sm:$0xf]
    %v313 = vld [vmem:[#allocation3 + $0x9c] sm:$0xf]
    %v314 = vld [vmem:[#allocation3 + $0xa0] sm:$0xf]
    %v315 = vld [vmem:[#allocation3 + $0xa4] sm:$0xf]
    %v316 = vld [vmem:[#allocation3 + $0xa8] sm:$0xf]
    %v317 = vld [vmem:[#allocation3 + $0xac] sm:$0xf]
    %v318 = vld [vmem:[#allocation3 + $0xb0] sm:$0xf]
    %v319 = vld [vmem:[#allocation3 + $0xb4] sm:$0xf]
    %v320 = vld [vmem:[#allocation3 + $0xb8] sm:$0xf]
    %v321 = vld [vmem:[#allocation3 + $0xbc] sm:$0xf]
    %v322 = vld [vmem:[#allocation3 + $0xc0] sm:$0xf]
    %v323 = vld [vmem:[#allocation3 + $0xc4] sm:$0xf]
    %v324 = vld [vmem:[#allocation3 + $0xc8] sm:$0xf]
    %v325 = vld [vmem:[#allocation3 + $0xcc] sm:$0xf]
    %v326 = vld [vmem:[#allocation3 + $0xd0] sm:$0xf]
    %v327 = vld [vmem:[#allocation3 + $0xd4] sm:$0xf]
    %v328 = vld [vmem:[#allocation3 + $0xd8] sm:$0xf]
    %v329 = vld [vmem:[#allocation3 + $0xdc] sm:$0xf]
    %v330 = vld [vmem:[#allocation3 + $0xe0] sm:$0xf]
    %v331 = vld [vmem:[#allocation3 + $0xe4] sm:$0xf]
    %v332 = vld [vmem:[#allocation3 + $0xe8] sm:$0xf]
    %v333 = vld [vmem:[#allocation3 + $0xec] sm:$0xf]
    %v334 = vld [vmem:[#allocation3 + $0xf0] sm:$0xf]
    %v335 = vld [vmem:[#allocation3 + $0xf4] sm:$0xf]
    %v336 = vld [vmem:[#allocation3 + $0xf8] sm:$0xf]
    %v337 = vld [vmem:[#allocation3 + $0xfc] sm:$0xf]
    %v338 = vld [vmem:[#allocation3 + $0x100] sm:$0xf]
    %v339 = vld [vmem:[#allocation3 + $0x104] sm:$0xf]
    %v340 = vld [vmem:[#allocation3 + $0x108] sm:$0xf]
    %v341 = vld [vmem:[#allocation3 + $0x10c] sm:$0xf]
    %v342 = vld [vmem:[#allocation3 + $0x110] sm:$0xf]
    %v343 = vld [vmem:[#allocation3 + $0x114] sm:$0xf]
    %v344 = vld [vmem:[#allocation3 + $0x118] sm:$0xf]
    %v345 = vld [vmem:[#allocation3 + $0x11c] sm:$0xf]
    %v346 = vld [vmem:[#allocation3 + $0x120] sm:$0xf]
    %v347 = vld [vmem:[#allocation3 + $0x124] sm:$0xf]
    %v348 = vld [vmem:[#allocation3 + $0x128] sm:$0xf]
    %v349 = vld [vmem:[#allocation3 + $0x12c] sm:$0xf]
    %v350 = vld [vmem:[#allocation3 + $0x130] sm:$0xf]
    %v351 = vld [vmem:[#allocation3 + $0x134] sm:$0xf]
    %v352 = vld [vmem:[#allocation3 + $0x138] sm:$0xf]
    %v353 = vld [vmem:[#allocation3 + $0x13c] sm:$0xf]
    %v354 = vld [vmem:[#allocation3 + $0x140] sm:$0xf]
    %v355 = vld [vmem:[#allocation3 + $0x144] sm:$0xf]
    %v356 = vld [vmem:[#allocation3 + $0x148] sm:$0xf]
    %v357 = vld [vmem:[#allocation3 + $0x14c] sm:$0xf]
    %v358 = vld [vmem:[#allocation3 + $0x150] sm:$0xf]
    %v359 = vld [vmem:[#allocation3 + $0x154] sm:$0xf]
    %v360 = vld [vmem:[#allocation3 + $0x158] sm:$0xf]
    %v361 = vld [vmem:[#allocation3 + $0x15c] sm:$0xf]
    %v362 = vld [vmem:[#allocation3 + $0x160] sm:$0xf]
    %v363 = vld [vmem:[#allocation3 + $0x164] sm:$0xf]
    %v364 = vld [vmem:[#allocation3 + $0x168] sm:$0xf]
    %v365 = vld [vmem:[#allocation3 + $0x16c] sm:$0xf]
    %v366 = vld [vmem:[#allocation3 + $0x170] sm:$0xf]
    %v367 = vld [vmem:[#allocation3 + $0x174] sm:$0xf]
    %v368 = vld [vmem:[#allocation3 + $0x178] sm:$0xf]
    %v369 = vld [vmem:[#allocation3 + $0x17c] sm:$0xf]
    %v370 = vld [vmem:[#allocation3 + $0x180] sm:$0xf]
    %v371 = vld [vmem:[#allocation3 + $0x184] sm:$0xf]
    %v372 = vld [vmem:[#allocation3 + $0x188] sm:$0xf]
    %v373 = vld [vmem:[#allocation3 + $0x18c] sm:$0xf]
    %v374 = vld [vmem:[#allocation3 + $0x190] sm:$0xf]
    %v375 = vld [vmem:[#allocation3 + $0x194] sm:$0xf]
    %v376 = vld [vmem:[#allocation3 + $0x198] sm:$0xf]
    %v377 = vld [vmem:[#allocation3 + $0x19c] sm:$0xf]
    %v378 = vld [vmem:[#allocation3 + $0x1a0] sm:$0xf]
    %v379 = vld [vmem:[#allocation3 + $0x1a4] sm:$0xf]
    %v380 = vld [vmem:[#allocation3 + $0x1a8] sm:$0xf]
    %v381 = vld [vmem:[#allocation3 + $0x1ac] sm:$0xf]
    %v382 = vld [vmem:[#allocation3 + $0x1b0] sm:$0xf]
    %v383 = vld [vmem:[#allocation3 + $0x1b4] sm:$0xf]
    %v384 = vld [vmem:[#allocation3 + $0x1b8] sm:$0xf]
    %v385 = vld [vmem:[#allocation3 + $0x1bc] sm:$0xf]
    %v386 = vld [vmem:[#allocation3 + $0x1c0] sm:$0xf]
    %v387 = vld [vmem:[#allocation3 + $0x1c4] sm:$0xf]
    %v388 = vld [vmem:[#allocation3 + $0x1c8] sm:$0xf]
    %v389 = vld [vmem:[#allocation3 + $0x1cc] sm:$0xf]
    %v390 = vld [vmem:[#allocation3 + $0x1d0] sm:$0xf]
    %v391 = vld [vmem:[#allocation3 + $0x1d4] sm:$0xf]
    %v392 = vld [vmem:[#allocation3 + $0x1d8] sm:$0xf]
    %v393 = vld [vmem:[#allocation3 + $0x1dc] sm:$0xf]
    %v394 = vld [vmem:[#allocation3 + $0x1e0] sm:$0xf]
    %v395 = vld [vmem:[#allocation3 + $0x1e4] sm:$0xf]
    %v396 = vld [vmem:[#allocation3 + $0x1e8] sm:$0xf]
    %v397 = vld [vmem:[#allocation3 + $0x1ec] sm:$0xf]
    %v398 = vld [vmem:[#allocation3 + $0x1f0] sm:$0xf]
    %v399 = vld [vmem:[#allocation3 + $0x1f4] sm:$0xf]
    %v400 = vld [vmem:[#allocation3 + $0x1f8] sm:$0xf]
    %v401 = vld [vmem:[#allocation3 + $0x1fc] sm:$0xf]
    %v530 = vunpack.c.l.b16 %v274
    %v531 = vunpack.c.l.b16 %v275
    %v532 = vunpack.c.l.b16 %v276
    %v533 = vunpack.c.l.b16 %v277
    %v534 = vunpack.c.l.b16 %v278
    %v535 = vunpack.c.l.b16 %v279
    %v536 = vunpack.c.l.b16 %v280
    %v537 = vunpack.c.l.b16 %v281
    %v538 = vunpack.c.l.b16 %v282
    %v539 = vunpack.c.l.b16 %v283
    %v540 = vunpack.c.l.b16 %v284
    %v541 = vunpack.c.l.b16 %v285
    %v542 = vunpack.c.l.b16 %v286
    %v543 = vunpack.c.l.b16 %v287
    %v544 = vunpack.c.l.b16 %v288
    %v545 = vunpack.c.l.b16 %v289
    %v546 = vunpack.c.l.b16 %v290
    %v547 = vunpack.c.l.b16 %v291
    %v548 = vunpack.c.l.b16 %v292
    %v549 = vunpack.c.l.b16 %v293
    %v550 = vunpack.c.l.b16 %v294
    %v551 = vunpack.c.l.b16 %v295
    %v552 = vunpack.c.l.b16 %v296
    %v553 = vunpack.c.l.b16 %v297
    %v554 = vunpack.c.l.b16 %v298
    %v555 = vunpack.c.l.b16 %v299
    %v556 = vunpack.c.l.b16 %v300
    %v557 = vunpack.c.l.b16 %v301
    %v558 = vunpack.c.l.b16 %v302
    %v559 = vunpack.c.l.b16 %v303
    %v560 = vunpack.c.l.b16 %v304
    %v561 = vunpack.c.l.b16 %v305
    %v562 = vunpack.c.l.b16 %v306
    %v563 = vunpack.c.l.b16 %v307
    %v564 = vunpack.c.l.b16 %v308
    %v565 = vunpack.c.l.b16 %v309
    %v566 = vunpack.c.l.b16 %v310
    %v567 = vunpack.c.l.b16 %v311
    %v568 = vunpack.c.l.b16 %v312
    %v569 = vunpack.c.l.b16 %v313
    %v570 = vunpack.c.l.b16 %v314
    %v571 = vunpack.c.l.b16 %v315
    %v572 = vunpack.c.l.b16 %v316
    %v573 = vunpack.c.l.b16 %v317
    %v574 = vunpack.c.l.b16 %v318
    %v575 = vunpack.c.l.b16 %v319
    %v576 = vunpack.c.l.b16 %v320
    %v577 = vunpack.c.l.b16 %v321
    %v578 = vunpack.c.l.b16 %v322
    %v579 = vunpack.c.l.b16 %v323
    %v580 = vunpack.c.l.b16 %v324
    %v581 = vunpack.c.l.b16 %v325
    %v582 = vunpack.c.l.b16 %v326
    %v583 = vunpack.c.l.b16 %v327
    %v584 = vunpack.c.l.b16 %v328
    %v585 = vunpack.c.l.b16 %v329
    %v586 = vunpack.c.l.b16 %v330
    %v587 = vunpack.c.l.b16 %v331
    %v588 = vunpack.c.l.b16 %v332
    %v589 = vunpack.c.l.b16 %v333
    %v590 = vunpack.c.l.b16 %v334
    %v591 = vunpack.c.l.b16 %v335
    %v592 = vunpack.c.l.b16 %v336
    %v593 = vunpack.c.l.b16 %v337
    %v594 = vunpack.c.l.b16 %v338
    %v595 = vunpack.c.l.b16 %v339
    %v596 = vunpack.c.l.b16 %v340
    %v597 = vunpack.c.l.b16 %v341
    %v598 = vunpack.c.l.b16 %v342
    %v599 = vunpack.c.l.b16 %v343
    %v600 = vunpack.c.l.b16 %v344
    %v601 = vunpack.c.l.b16 %v345
    %v602 = vunpack.c.l.b16 %v346
    %v603 = vunpack.c.l.b16 %v347
    %v604 = vunpack.c.l.b16 %v348
    %v605 = vunpack.c.l.b16 %v349
    %v606 = vunpack.c.l.b16 %v350
    %v607 = vunpack.c.l.b16 %v351
    %v608 = vunpack.c.l.b16 %v352
    %v609 = vunpack.c.l.b16 %v353
    %v610 = vunpack.c.l.b16 %v354
    %v611 = vunpack.c.l.b16 %v355
    %v612 = vunpack.c.l.b16 %v356
    %v613 = vunpack.c.l.b16 %v357
    %v614 = vunpack.c.l.b16 %v358
    %v615 = vunpack.c.l.b16 %v359
    %v616 = vunpack.c.l.b16 %v360
    %v617 = vunpack.c.l.b16 %v361
    %v618 = vunpack.c.l.b16 %v362
    %v619 = vunpack.c.l.b16 %v363
    %v620 = vunpack.c.l.b16 %v364
    %v621 = vunpack.c.l.b16 %v365
    %v622 = vunpack.c.l.b16 %v366
    %v623 = vunpack.c.l.b16 %v367
    %v624 = vunpack.c.l.b16 %v368
    %v625 = vunpack.c.l.b16 %v369
    %v626 = vunpack.c.l.b16 %v370
    %v627 = vunpack.c.l.b16 %v371
    %v628 = vunpack.c.l.b16 %v372
    %v629 = vunpack.c.l.b16 %v373
    %v630 = vunpack.c.l.b16 %v374
    %v631 = vunpack.c.l.b16 %v375
    %v632 = vunpack.c.l.b16 %v376
    %v633 = vunpack.c.l.b16 %v377
    %v634 = vunpack.c.l.b16 %v378
    %v635 = vunpack.c.l.b16 %v379
    %v636 = vunpack.c.l.b16 %v380
    %v637 = vunpack.c.l.b16 %v381
    %v638 = vunpack.c.l.b16 %v382
    %v639 = vunpack.c.l.b16 %v383
    %v640 = vunpack.c.l.b16 %v384
    %v641 = vunpack.c.l.b16 %v385
    %v642 = vunpack.c.l.b16 %v386
    %v643 = vunpack.c.l.b16 %v387
    %v644 = vunpack.c.l.b16 %v388
    %v645 = vunpack.c.l.b16 %v389
    %v646 = vunpack.c.l.b16 %v390
    %v647 = vunpack.c.l.b16 %v391
    %v648 = vunpack.c.l.b16 %v392
    %v649 = vunpack.c.l.b16 %v393
    %v650 = vunpack.c.l.b16 %v394
    %v651 = vunpack.c.l.b16 %v395
    %v652 = vunpack.c.l.b16 %v396
    %v653 = vunpack.c.l.b16 %v397
    %v654 = vunpack.c.l.b16 %v398
    %v655 = vunpack.c.l.b16 %v399
    %v656 = vunpack.c.l.b16 %v400
    %v657 = vunpack.c.l.b16 %v401
    %v658 = vpack.c.b16 %v531, %v530
    %v659 = vpack.c.b16 %v533, %v532
    %v660 = vpack.c.b16 %v535, %v534
    %v661 = vpack.c.b16 %v537, %v536
    %v662 = vpack.c.b16 %v539, %v538
    %v663 = vpack.c.b16 %v541, %v540
    %v664 = vpack.c.b16 %v543, %v542
    %v665 = vpack.c.b16 %v545, %v544
    %v666 = vpack.c.b16 %v547, %v546
    %v667 = vpack.c.b16 %v549, %v548
    %v668 = vpack.c.b16 %v551, %v550
    %v669 = vpack.c.b16 %v553, %v552
    %v670 = vpack.c.b16 %v555, %v554
    %v671 = vpack.c.b16 %v557, %v556
    %v672 = vpack.c.b16 %v559, %v558
    %v673 = vpack.c.b16 %v561, %v560
    %v674 = vpack.c.b16 %v563, %v562
    %v675 = vpack.c.b16 %v565, %v564
    %v676 = vpack.c.b16 %v567, %v566
    %v677 = vpack.c.b16 %v569, %v568
    %v678 = vpack.c.b16 %v571, %v570
    %v679 = vpack.c.b16 %v573, %v572
    %v680 = vpack.c.b16 %v575, %v574
    %v681 = vpack.c.b16 %v577, %v576
    %v682 = vpack.c.b16 %v579, %v578
    %v683 = vpack.c.b16 %v581, %v580
    %v684 = vpack.c.b16 %v583, %v582
    %v685 = vpack.c.b16 %v585, %v584
    %v686 = vpack.c.b16 %v587, %v586
    %v687 = vpack.c.b16 %v589, %v588
    %v688 = vpack.c.b16 %v591, %v590
    %v689 = vpack.c.b16 %v593, %v592
    %v690 = vpack.c.b16 %v595, %v594
    %v691 = vpack.c.b16 %v597, %v596
    %v692 = vpack.c.b16 %v599, %v598
    %v693 = vpack.c.b16 %v601, %v600
    %v694 = vpack.c.b16 %v603, %v602
    %v695 = vpack.c.b16 %v605, %v604
    %v696 = vpack.c.b16 %v607, %v606
    %v697 = vpack.c.b16 %v609, %v608
    %v698 = vpack.c.b16 %v611, %v610
    %v699 = vpack.c.b16 %v613, %v612
    %v700 = vpack.c.b16 %v615, %v614
    %v701 = vpack.c.b16 %v617, %v616
    %v702 = vpack.c.b16 %v619, %v618
    %v703 = vpack.c.b16 %v621, %v620
    %v704 = vpack.c.b16 %v623, %v622
    %v705 = vpack.c.b16 %v625, %v624
    %v706 = vpack.c.b16 %v627, %v626
    %v707 = vpack.c.b16 %v629, %v628
    %v708 = vpack.c.b16 %v631, %v630
    %v709 = vpack.c.b16 %v633, %v632
    %v710 = vpack.c.b16 %v635, %v634
    %v711 = vpack.c.b16 %v637, %v636
    %v712 = vpack.c.b16 %v639, %v638
    %v713 = vpack.c.b16 %v641, %v640
    %v714 = vpack.c.b16 %v643, %v642
    %v715 = vpack.c.b16 %v645, %v644
    %v716 = vpack.c.b16 %v647, %v646
    %v717 = vpack.c.b16 %v649, %v648
    %v718 = vpack.c.b16 %v651, %v650
    %v719 = vpack.c.b16 %v653, %v652
    %v720 = vpack.c.b16 %v655, %v654
    %v721 = vpack.c.b16 %v657, %v656
    %786 = vmatprep.subr.bf16.mxu0 0
    %787 = vmatpush1.bf16.msra.mxu0 %v658
    %788 = vmatprep.subr.bf16.mxu0 0
    %789 = vmatpush1.bf16.msra.mxu0 %v659
    %790 = vmatprep.subr.bf16.mxu0 0
    %791 = vmatpush1.bf16.msra.mxu0 %v660
    %792 = vmatprep.subr.bf16.mxu0 0
    %793 = vmatpush1.bf16.msra.mxu0 %v661
    %794 = vmatprep.subr.bf16.mxu0 0
    %795 = vmatpush1.bf16.msra.mxu0 %v662
    %796 = vmatprep.subr.bf16.mxu0 0
    %797 = vmatpush1.bf16.msra.mxu0 %v663
    %798 = vmatprep.subr.bf16.mxu0 0
    %799 = vmatpush1.bf16.msra.mxu0 %v664
    %800 = vmatprep.subr.bf16.mxu0 0
    %801 = vmatpush1.bf16.msra.mxu0 %v665
    %802 = vmatprep.subr.bf16.mxu0 0
    %803 = vmatpush1.bf16.msra.mxu0 %v666
    %804 = vmatprep.subr.bf16.mxu0 0
    %805 = vmatpush1.bf16.msra.mxu0 %v667
    %806 = vmatprep.subr.bf16.mxu0 0
    %807 = vmatpush1.bf16.msra.mxu0 %v668
    %808 = vmatprep.subr.bf16.mxu0 0
    %809 = vmatpush1.bf16.msra.mxu0 %v669
    %810 = vmatprep.subr.bf16.mxu0 0
    %811 = vmatpush1.bf16.msra.mxu0 %v670
    %812 = vmatprep.subr.bf16.mxu0 0
    %813 = vmatpush1.bf16.msra.mxu0 %v671
    %814 = vmatprep.subr.bf16.mxu0 0
    %815 = vmatpush1.bf16.msra.mxu0 %v672
    %816 = vmatprep.subr.bf16.mxu0 0
    %817 = vmatpush1.bf16.msra.mxu0 %v673
    %818 = vmatprep.mubr.bf16.mxu0 %v246
    %819 = vmatmul.mubr.bf16.gmra.mrb[0].mxu0 %v245
    %v820 = vpop.f32.mrb[0].mxu0
    %v821 = vadd.f32 0.0, %v820
    %v822 = vpop.f32.mrb[0].mxu0
    %v823 = vpop.f32.mrb[0].mxu0
    %v824 = vadd.f32 0.0, %v823
    %v825 = vpop.f32.mrb[0].mxu0
    %826 = vdwg.mxu0
    %827 = vmatprep.subr.bf16.mxu0 0
    %828 = vmatpush1.bf16.msra.mxu0 %v674
    %829 = vmatprep.subr.bf16.mxu0 0
    %830 = vmatpush1.bf16.msra.mxu0 %v675
    %831 = vmatprep.subr.bf16.mxu0 0
    %832 = vmatpush1.bf16.msra.mxu0 %v676
    %833 = vmatprep.subr.bf16.mxu0 0
    %834 = vmatpush1.bf16.msra.mxu0 %v677
    %835 = vmatprep.subr.bf16.mxu0 0
    %836 = vmatpush1.bf16.msra.mxu0 %v678
    %837 = vmatprep.subr.bf16.mxu0 0
    %838 = vmatpush1.bf16.msra.mxu0 %v679
    %839 = vmatprep.subr.bf16.mxu0 0
    %840 = vmatpush1.bf16.msra.mxu0 %v680
    %841 = vmatprep.subr.bf16.mxu0 0
    %842 = vmatpush1.bf16.msra.mxu0 %v681
    %843 = vmatprep.subr.bf16.mxu0 0
    %844 = vmatpush1.bf16.msra.mxu0 %v682
    %845 = vmatprep.subr.bf16.mxu0 0
    %846 = vmatpush1.bf16.msra.mxu0 %v683
    %847 = vmatprep.subr.bf16.mxu0 0
    %848 = vmatpush1.bf16.msra.mxu0 %v684
    %849 = vmatprep.subr.bf16.mxu0 0
    %850 = vmatpush1.bf16.msra.mxu0 %v685
    %851 = vmatprep.subr.bf16.mxu0 0
    %852 = vmatpush1.bf16.msra.mxu0 %v686
    %853 = vmatprep.subr.bf16.mxu0 0
    %854 = vmatpush1.bf16.msra.mxu0 %v687
    %855 = vmatprep.subr.bf16.mxu0 0
    %856 = vmatpush1.bf16.msra.mxu0 %v688
    %857 = vmatprep.subr.bf16.mxu0 0
    %858 = vmatpush1.bf16.msra.mxu0 %v689
    %859 = vmatprep.mubr.bf16.mxu0 %v248
    %860 = vmatmul.mubr.bf16.gmra.mrb[0].mxu0 %v247
    %v861 = vpop.f32.mrb[0].mxu0
    %v862 = vadd.f32 %v821, %v861
    %v863 = vpop.f32.mrb[0].mxu0
    %v864 = vpop.f32.mrb[0].mxu0
    %v865 = vadd.f32 %v824, %v864
    %v866 = vpop.f32.mrb[0].mxu0
    %867 = vdwg.mxu0
    %868 = vmatprep.subr.bf16.mxu0 0
    %869 = vmatpush1.bf16.msra.mxu0 %v690
    %870 = vmatprep.subr.bf16.mxu0 0
    %871 = vmatpush1.bf16.msra.mxu0 %v691
    %872 = vmatprep.subr.bf16.mxu0 0
    %873 = vmatpush1.bf16.msra.mxu0 %v692
    %874 = vmatprep.subr.bf16.mxu0 0
    %875 = vmatpush1.bf16.msra.mxu0 %v693
    %876 = vmatprep.subr.bf16.mxu0 0
    %877 = vmatpush1.bf16.msra.mxu0 %v694
    %878 = vmatprep.subr.bf16.mxu0 0
    %879 = vmatpush1.bf16.msra.mxu0 %v695
    %880 = vmatprep.subr.bf16.mxu0 0
    %881 = vmatpush1.bf16.msra.mxu0 %v696
    %882 = vmatprep.subr.bf16.mxu0 0
    %883 = vmatpush1.bf16.msra.mxu0 %v697
    %884 = vmatprep.subr.bf16.mxu0 0
    %885 = vmatpush1.bf16.msra.mxu0 %v698
    %886 = vmatprep.subr.bf16.mxu0 0
    %887 = vmatpush1.bf16.msra.mxu0 %v699
    %888 = vmatprep.subr.bf16.mxu0 0
    %889 = vmatpush1.bf16.msra.mxu0 %v700
    %890 = vmatprep.subr.bf16.mxu0 0
    %891 = vmatpush1.bf16.msra.mxu0 %v701
    %892 = vmatprep.subr.bf16.mxu0 0
    %893 = vmatpush1.bf16.msra.mxu0 %v702
    %894 = vmatprep.subr.bf16.mxu0 0
    %895 = vmatpush1.bf16.msra.mxu0 %v703
    %896 = vmatprep.subr.bf16.mxu0 0
    %897 = vmatpush1.bf16.msra.mxu0 %v704
    %898 = vmatprep.subr.bf16.mxu0 0
    %899 = vmatpush1.bf16.msra.mxu0 %v705
    %900 = vmatprep.mubr.bf16.mxu0 %v250
    %901 = vmatmul.mubr.bf16.gmra.mrb[0].mxu0 %v249
    %v902 = vpop.f32.mrb[0].mxu0
    %v903 = vadd.f32 %v862, %v902
    %v904 = vpop.f32.mrb[0].mxu0
    %v905 = vpop.f32.mrb[0].mxu0
    %v906 = vadd.f32 %v865, %v905
    %v907 = vpop.f32.mrb[0].mxu0
    %908 = vdwg.mxu0
    %909 = vmatprep.subr.bf16.mxu0 0
    %910 = vmatpush1.bf16.msra.mxu0 %v706
    %911 = vmatprep.subr.bf16.mxu0 0
    %912 = vmatpush1.bf16.msra.mxu0 %v707
    %913 = vmatprep.subr.bf16.mxu0 0
    %914 = vmatpush1.bf16.msra.mxu0 %v708
    %915 = vmatprep.subr.bf16.mxu0 0
    %916 = vmatpush1.bf16.msra.mxu0 %v709
    %917 = vmatprep.subr.bf16.mxu0 0
    %918 = vmatpush1.bf16.msra.mxu0 %v710
    %919 = vmatprep.subr.bf16.mxu0 0
    %920 = vmatpush1.bf16.msra.mxu0 %v711
    %921 = vmatprep.subr.bf16.mxu0 0
    %922 = vmatpush1.bf16.msra.mxu0 %v712
    %923 = vmatprep.subr.bf16.mxu0 0
    %924 = vmatpush1.bf16.msra.mxu0 %v713
    %925 = vmatprep.subr.bf16.mxu0 0
    %926 = vmatpush1.bf16.msra.mxu0 %v714
    %927 = vmatprep.subr.bf16.mxu0 0
    %928 = vmatpush1.bf16.msra.mxu0 %v715
    %929 = vmatprep.subr.bf16.mxu0 0
    %930 = vmatpush1.bf16.msra.mxu0 %v716
    %931 = vmatprep.subr.bf16.mxu0 0
    %932 = vmatpush1.bf16.msra.mxu0 %v717
    %933 = vmatprep.subr.bf16.mxu0 0
    %934 = vmatpush1.bf16.msra.mxu0 %v718
    %935 = vmatprep.subr.bf16.mxu0 0
    %936 = vmatpush1.bf16.msra.mxu0 %v719
    %937 = vmatprep.subr.bf16.mxu0 0
    %938 = vmatpush1.bf16.msra.mxu0 %v720
    %939 = vmatprep.subr.bf16.mxu0 0
    %940 = vmatpush1.bf16.msra.mxu0 %v721
    %941 = vmatprep.mubr.bf16.mxu0 %v252
    %942 = vmatmul.mubr.bf16.gmra.mrb[0].mxu0 %v251
    %v943 = vpop.f32.mrb[0].mxu0
    %v944 = vadd.f32 %v903, %v943
    %v945 = vpop.f32.mrb[0].mxu0
    %v946 = vpop.f32.mrb[0].mxu0
    %v947 = vadd.f32 %v906, %v946
    %v948 = vpop.f32.mrb[0].mxu0
    %949 = vdwg.mxu0
    %v950 = vld [vmem:[%s3] sm:$0x1]
    %v952 = vlaneseq
    %v953 = vshrl.u32 %v952, 7
    %v954 = vsub.s32 0, %v953
    %v955 = vrot.slane %v950, %v954
    %v957 = vadd.f32 %v944, %v955
    %v958 = vadd.f32 %v947, %v955
    %959 = vst [vmem:[%s18] sm:$0xff] %v957
    %960 = vst [vmem:[%s18 + $0x8] sm:$0xff] %v958
    %v961 = vpack.c.bf16 %v947, %v944
    %v962 = vld [vmem:[%s4] sm:$0xf]
    %v963 = vld [vmem:[%s4 + $0x4] sm:$0xf]
    %v964 = vld [vmem:[%s4 + $0x8] sm:$0xf]
    %v965 = vld [vmem:[%s4 + $0xc] sm:$0xf]
    %v966 = vld [vmem:[%s4 + $0x10] sm:$0xf]
    %v967 = vld [vmem:[%s4 + $0x14] sm:$0xf]
    %v968 = vld [vmem:[%s4 + $0x18] sm:$0xf]
    %v969 = vld [vmem:[%s4 + $0x1c] sm:$0xf]
    %v970 = vld [vmem:[%s4 + $0x20] sm:$0xf]
    %v971 = vld [vmem:[%s4 + $0x24] sm:$0xf]
    %v972 = vld [vmem:[%s4 + $0x28] sm:$0xf]
    %v973 = vld [vmem:[%s4 + $0x2c] sm:$0xf]
    %v974 = vld [vmem:[%s4 + $0x30] sm:$0xf]
    %v975 = vld [vmem:[%s4 + $0x34] sm:$0xf]
    %v976 = vld [vmem:[%s4 + $0x38] sm:$0xf]
    %v977 = vld [vmem:[%s4 + $0x3c] sm:$0xf]
    %v994 = vunpack.c.l.b16 %v962
    %v995 = vunpack.c.l.b16 %v963
    %v996 = vunpack.c.l.b16 %v964
    %v997 = vunpack.c.l.b16 %v965
    %v998 = vunpack.c.l.b16 %v966
    %v999 = vunpack.c.l.b16 %v967
    %v1000 = vunpack.c.l.b16 %v968
    %v1001 = vunpack.c.l.b16 %v969
    %v1002 = vunpack.c.l.b16 %v970
    %v1003 = vunpack.c.l.b16 %v971
    %v1004 = vunpack.c.l.b16 %v972
    %v1005 = vunpack.c.l.b16 %v973
    %v1006 = vunpack.c.l.b16 %v974
    %v1007 = vunpack.c.l.b16 %v975
    %v1008 = vunpack.c.l.b16 %v976
    %v1009 = vunpack.c.l.b16 %v977
    %v1010 = vpack.c.b16 %v995, %v994
    %v1011 = vpack.c.b16 %v997, %v996
    %v1012 = vpack.c.b16 %v999, %v998
    %v1013 = vpack.c.b16 %v1001, %v1000
    %v1014 = vpack.c.b16 %v1003, %v1002
    %v1015 = vpack.c.b16 %v1005, %v1004
    %v1016 = vpack.c.b16 %v1007, %v1006
    %v1017 = vpack.c.b16 %v1009, %v1008
    %1026 = vmatprep.subr.bf16.mxu0 0
    %1027 = vmatpush1.bf16.msra.mxu0 %v1010
    %1028 = vmatprep.subr.bf16.mxu0 0
    %1029 = vmatpush1.bf16.msra.mxu0 %v1011
    %1030 = vmatprep.subr.bf16.mxu0 0
    %1031 = vmatpush1.bf16.msra.mxu0 %v1012
    %1032 = vmatprep.subr.bf16.mxu0 0
    %1033 = vmatpush1.bf16.msra.mxu0 %v1013
    %1034 = vmatprep.subr.bf16.mxu0 0
    %1035 = vmatpush1.bf16.msra.mxu0 %v1014
    %1036 = vmatprep.subr.bf16.mxu0 0
    %1037 = vmatpush1.bf16.msra.mxu0 %v1015
    %1038 = vmatprep.subr.bf16.mxu0 0
    %1039 = vmatpush1.bf16.msra.mxu0 %v1016
    %1040 = vmatprep.subr.bf16.mxu0 0
    %1041 = vmatpush1.bf16.msra.mxu0 %v1017
    %1042 = vmatprep.subr.bf16.mxu0 0
    %1043 = vmatpush1.bf16.msra.mxu0 0
    %1044 = vmatprep.subr.bf16.mxu0 0
    %1045 = vmatpush1.bf16.msra.mxu0 0
    %1046 = vmatprep.subr.bf16.mxu0 0
    %1047 = vmatpush1.bf16.msra.mxu0 0
    %1048 = vmatprep.subr.bf16.mxu0 0
    %1049 = vmatpush1.bf16.msra.mxu0 0
    %1050 = vmatprep.subr.bf16.mxu0 0
    %1051 = vmatpush1.bf16.msra.mxu0 0
    %1052 = vmatprep.subr.bf16.mxu0 0
    %1053 = vmatpush1.bf16.msra.mxu0 0
    %1054 = vmatprep.subr.bf16.mxu0 0
    %1055 = vmatpush1.bf16.msra.mxu0 0
    %1056 = vmatprep.subr.bf16.mxu0 0
    %1057 = vmatpush1.bf16.msra.mxu0 0
    %1058 = vmatprep.mubr.bf16.mxu0 0
    %1059 = vmatmul.mubr.bf16.gmra.mrb[0].mxu0 %v961
    %v1060 = vpop.f32.mrb[0].mxu0
    %v1061 = vadd.f32 0.0, %v1060
    %v1062 = vpop.f32.mrb[0].mxu0
    %v1063 = vpop.f32.mrb[0].mxu0
    %v1064 = vadd.f32 0.0, %v1063
    %v1065 = vpop.f32.mrb[0].mxu0
    %1066 = vdwg.mxu0
    %v1067 = vld [vmem:[%s5] sm:$0x1]
    %v1068 = vld [vmem:[%s6] sm:$0x1]
    %v1069 = vmul.f32 %v1061, %v262
    %v1070 = vmul.f32 %v1064, %v263
    %v1071 = vadd.f32 %v1069, %v1070
    %v1072 = vrot.slane %v1071, 4
    %v1073 = vadd.f32 %v1071, %v1072
    %v1074 = vrot.slane %v1073, 2
    %v1075 = vadd.f32 %v1073, %v1074
    %v1076 = vrot.slane %v1075, 1
    %v1077 = vadd.f32 %v1075, %v1076
    %v1078 = vmul.f32 %v1077, 0.5
    %v1079 = vmul.f32 %v1069, %v1061
    %v1080 = vmul.f32 %v1070, %v1064
    %v1081 = vadd.f32 %v1079, %v1080
    %v1082 = vrot.slane %v1081, 4
    %v1083 = vadd.f32 %v1081, %v1082
    %v1084 = vrot.slane %v1083, 2
    %v1085 = vadd.f32 %v1083, %v1084
    %v1086 = vrot.slane %v1085, 1
    %v1087 = vadd.f32 %v1085, %v1086
    %v1088 = vmul.f32 %v1087, 0.5
    %v1089 = vmul.f32 %v1078, %v1078
    %v1090 = vsub.f32 %v1088, %v1089
    %v1091 = vmax.f32 %v1090, 0.0
    %v1092 = vadd.f32 %v1091, 1e-05
    %v1093 = vrsqrt.pop %v1092
    %v1094 = vmul.f32 %v1067, %v1093
    %v1095 = vmul.f32 %v1078, %v1094
    %v1096 = vsub.f32 %v1068, %v1095
    %v1097 = vmul.f32 %v1061, %v272
    %v1098 = vmul.f32 %v1064, %v273
    %v1099 = vadd.f32 %v1097, %v1098
    %v1100 = vrot.slane %v1099, 4
    %v1101 = vadd.f32 %v1099, %v1100
    %v1102 = vrot.slane %v1101, 2
    %v1103 = vadd.f32 %v1101, %v1102
    %v1104 = vrot.slane %v1103, 1
    %v1105 = vadd.f32 %v1103, %v1104
    %v1106 = vmul.f32 %v1105, 0.5
    %v1107 = vmul.f32 %v1097, %v1061
    %v1108 = vmul.f32 %v1098, %v1064
    %v1109 = vadd.f32 %v1107, %v1108
    %v1110 = vrot.slane %v1109, 4
    %v1111 = vadd.f32 %v1109, %v1110
    %v1112 = vrot.slane %v1111, 2
    %v1113 = vadd.f32 %v1111, %v1112
    %v1114 = vrot.slane %v1113, 1
    %v1115 = vadd.f32 %v1113, %v1114
    %v1116 = vmul.f32 %v1115, 0.5
    %v1117 = vmul.f32 %v1106, %v1106
    %v1118 = vsub.f32 %v1116, %v1117
    %v1119 = vmax.f32 %v1118, 0.0
    %v1120 = vadd.f32 %v1119, 1e-05
    %v1121 = vrsqrt.pop %v1120
    %v1122 = vmul.f32 %v1067, %v1121
    %v1123 = vmul.f32 %v1106, %v1122
    %v1124 = vsub.f32 %v1068, %v1123
    %v1125 = vsel %vm256, 1, 0
    %v1126 = vsel %vm257, 1, 0
    %vm1127 = vcmp.eq.s32.totalorder %v1125, 1
    %vm1128 = vcmp.eq.s32.totalorder %v1126, 1
    %v1130 = vlaneseq
    %v1131 = vshrl.u32 %v1130, 7
    %v1132 = vsub.s32 0, %v1131
    %v1133 = vrot.slane %v1094, %v1132
    %v1136 = vlaneseq
    %v1137 = vshrl.u32 %v1136, 7
    %v1138 = vsub.s32 0, %v1137
    %v1139 = vrot.slane %v1122, %v1138
    %v1141 = vsel %vm1127, %v1133, %v1139
    %v1142 = vsel %vm1128, %v1133, %v1139
    %v1144 = vlaneseq
    %v1145 = vshrl.u32 %v1144, 7
    %v1146 = vsub.s32 0, %v1145
    %v1147 = vrot.slane %v1096, %v1146
    %v1150 = vlaneseq
    %v1151 = vshrl.u32 %v1150, 7
    %v1152 = vsub.s32 0, %v1151
    %v1153 = vrot.slane %v1124, %v1152
    %v1155 = vsel %vm1127, %v1147, %v1153
    %v1156 = vsel %vm1128, %v1147, %v1153
    %v1157 = vmul.f32 %v1061, %v1141
    %v1158 = vmul.f32 %v1064, %v1142
    %v1159 = vadd.f32 %v1157, %v1155
    %v1160 = vadd.f32 %v1158, %v1156
    %v1161 = vmax.f32 %v1159, 0.0
    %v1162 = vmax.f32 %v1160, 0.0
    %v1163 = vpack.c.bf16 %v1162, %v1161
    %v1164 = vld [vmem:[%s7] sm:$0xf]
    %v1165 = vld [vmem:[%s7 + $0x4] sm:$0xf]
    %v1166 = vld [vmem:[%s7 + $0x8] sm:$0xf]
    %v1167 = vld [vmem:[%s7 + $0xc] sm:$0xf]
    %v1168 = vld [vmem:[%s7 + $0x10] sm:$0xf]
    %v1169 = vld [vmem:[%s7 + $0x14] sm:$0xf]
    %v1170 = vld [vmem:[%s7 + $0x18] sm:$0xf]
    %v1171 = vld [vmem:[%s7 + $0x1c] sm:$0xf]
    %v1172 = vld [vmem:[%s7 + $0x20] sm:$0xf]
    %v1173 = vld [vmem:[%s7 + $0x24] sm:$0xf]
    %v1174 = vld [vmem:[%s7 + $0x28] sm:$0xf]
    %v1175 = vld [vmem:[%s7 + $0x2c] sm:$0xf]
    %v1176 = vld [vmem:[%s7 + $0x30] sm:$0xf]
    %v1177 = vld [vmem:[%s7 + $0x34] sm:$0xf]
    %v1178 = vld [vmem:[%s7 + $0x38] sm:$0xf]
    %v1179 = vld [vmem:[%s7 + $0x3c] sm:$0xf]
    %v1196 = vunpack.c.l.b16 %v1164
    %v1197 = vunpack.c.l.b16 %v1165
    %v1198 = vunpack.c.l.b16 %v1166
    %v1199 = vunpack.c.l.b16 %v1167
    %v1200 = vunpack.c.l.b16 %v1168
    %v1201 = vunpack.c.l.b16 %v1169
    %v1202 = vunpack.c.l.b16 %v1170
    %v1203 = vunpack.c.l.b16 %v1171
    %v1204 = vunpack.c.l.b16 %v1172
    %v1205 = vunpack.c.l.b16 %v1173
    %v1206 = vunpack.c.l.b16 %v1174
    %v1207 = vunpack.c.l.b16 %v1175
    %v1208 = vunpack.c.l.b16 %v1176
    %v1209 = vunpack.c.l.b16 %v1177
    %v1210 = vunpack.c.l.b16 %v1178
    %v1211 = vunpack.c.l.b16 %v1179
    %v1212 = vpack.c.b16 %v1197, %v1196
    %v1213 = vpack.c.b16 %v1199, %v1198
    %v1214 = vpack.c.b16 %v1201, %v1200
    %v1215 = vpack.c.b16 %v1203, %v1202
    %v1216 = vpack.c.b16 %v1205, %v1204
    %v1217 = vpack.c.b16 %v1207, %v1206
    %v1218 = vpack.c.b16 %v1209, %v1208
    %v1219 = vpack.c.b16 %v1211, %v1210
    %1228 = vmatprep.subr.bf16.mxu0 0
    %1229 = vmatpush1.bf16.msra.mxu0 %v1212
    %1230 = vmatprep.subr.bf16.mxu0 0
    %1231 = vmatpush1.bf16.msra.mxu0 %v1213
    %1232 = vmatprep.subr.bf16.mxu0 0
    %1233 = vmatpush1.bf16.msra.mxu0 %v1214
    %1234 = vmatprep.subr.bf16.mxu0 0
    %1235 = vmatpush1.bf16.msra.mxu0 %v1215
    %1236 = vmatprep.subr.bf16.mxu0 0
    %1237 = vmatpush1.bf16.msra.mxu0 %v1216
    %1238 = vmatprep.subr.bf16.mxu0 0
    %1239 = vmatpush1.bf16.msra.mxu0 %v1217
    %1240 = vmatprep.subr.bf16.mxu0 0
    %1241 = vmatpush1.bf16.msra.mxu0 %v1218
    %1242 = vmatprep.subr.bf16.mxu0 0
    %1243 = vmatpush1.bf16.msra.mxu0 %v1219
    %1244 = vmatprep.subr.bf16.mxu0 0
    %1245 = vmatpush1.bf16.msra.mxu0 0
    %1246 = vmatprep.subr.bf16.mxu0 0
    %1247 = vmatpush1.bf16.msra.mxu0 0
    %1248 = vmatprep.subr.bf16.mxu0 0
    %1249 = vmatpush1.bf16.msra.mxu0 0
    %1250 = vmatprep.subr.bf16.mxu0 0
    %1251 = vmatpush1.bf16.msra.mxu0 0
    %1252 = vmatprep.subr.bf16.mxu0 0
    %1253 = vmatpush1.bf16.msra.mxu0 0
    %1254 = vmatprep.subr.bf16.mxu0 0
    %1255 = vmatpush1.bf16.msra.mxu0 0
    %1256 = vmatprep.subr.bf16.mxu0 0
    %1257 = vmatpush1.bf16.msra.mxu0 0
    %1258 = vmatprep.subr.bf16.mxu0 0
    %1259 = vmatpush1.bf16.msra.mxu0 0
    %1260 = vmatprep.mubr.bf16.mxu0 0
    %1261 = vmatmul.mubr.bf16.gmra.mrb[0].mxu0 %v1163
    %v1262 = vpop.f32.mrb[0].mxu0
    %v1263 = vadd.f32 0.0, %v1262
    %v1264 = vpop.f32.mrb[0].mxu0
    %v1265 = vpop.f32.mrb[0].mxu0
    %v1266 = vadd.f32 0.0, %v1265
    %v1267 = vpop.f32.mrb[0].mxu0
    %1268 = vdwg.mxu0
    %v1269 = vld [vmem:[%s8] sm:$0x1]
    %v1270 = vld [vmem:[%s9] sm:$0x1]
    %v1271 = vmul.f32 %v1263, %v262
    %v1272 = vmul.f32 %v1266, %v263
    %v1273 = vadd.f32 %v1271, %v1272
    %v1274 = vrot.slane %v1273, 4
    %v1275 = vadd.f32 %v1273, %v1274
    %v1276 = vrot.slane %v1275, 2
    %v1277 = vadd.f32 %v1275, %v1276
    %v1278 = vrot.slane %v1277, 1
    %v1279 = vadd.f32 %v1277, %v1278
    %v1280 = vmul.f32 %v1279, 0.5
    %v1281 = vmul.f32 %v1271, %v1263
    %v1282 = vmul.f32 %v1272, %v1266
    %v1283 = vadd.f32 %v1281, %v1282
    %v1284 = vrot.slane %v1283, 4
    %v1285 = vadd.f32 %v1283, %v1284
    %v1286 = vrot.slane %v1285, 2
    %v1287 = vadd.f32 %v1285, %v1286
    %v1288 = vrot.slane %v1287, 1
    %v1289 = vadd.f32 %v1287, %v1288
    %v1290 = vmul.f32 %v1289, 0.5
    %v1291 = vmul.f32 %v1280, %v1280
    %v1292 = vsub.f32 %v1290, %v1291
    %v1293 = vmax.f32 %v1292, 0.0
    %v1294 = vadd.f32 %v1293, 1e-05
    %v1295 = vrsqrt.pop %v1294
    %v1296 = vmul.f32 %v1269, %v1295
    %v1297 = vmul.f32 %v1280, %v1296
    %v1298 = vsub.f32 %v1270, %v1297
    %v1299 = vmul.f32 %v1263, %v272
    %v1300 = vmul.f32 %v1266, %v273
    %v1301 = vadd.f32 %v1299, %v1300
    %v1302 = vrot.slane %v1301, 4
    %v1303 = vadd.f32 %v1301, %v1302
    %v1304 = vrot.slane %v1303, 2
    %v1305 = vadd.f32 %v1303, %v1304
    %v1306 = vrot.slane %v1305, 1
    %v1307 = vadd.f32 %v1305, %v1306
    %v1308 = vmul.f32 %v1307, 0.5
    %v1309 = vmul.f32 %v1299, %v1263
    %v1310 = vmul.f32 %v1300, %v1266
    %v1311 = vadd.f32 %v1309, %v1310
    %v1312 = vrot.slane %v1311, 4
    %v1313 = vadd.f32 %v1311, %v1312
    %v1314 = vrot.slane %v1313, 2
    %v1315 = vadd.f32 %v1313, %v1314
    %v1316 = vrot.slane %v1315, 1
    %v1317 = vadd.f32 %v1315, %v1316
    %v1318 = vmul.f32 %v1317, 0.5
    %v1319 = vmul.f32 %v1308, %v1308
    %v1320 = vsub.f32 %v1318, %v1319
    %v1321 = vmax.f32 %v1320, 0.0
    %v1322 = vadd.f32 %v1321, 1e-05
    %v1323 = vrsqrt.pop %v1322
    %v1324 = vmul.f32 %v1269, %v1323
    %v1325 = vmul.f32 %v1308, %v1324
    %v1326 = vsub.f32 %v1270, %v1325
    %v1328 = vlaneseq
    %v1329 = vshrl.u32 %v1328, 7
    %v1330 = vsub.s32 0, %v1329
    %v1331 = vrot.slane %v1296, %v1330
    %v1334 = vlaneseq
    %v1335 = vshrl.u32 %v1334, 7
    %v1336 = vsub.s32 0, %v1335
    %v1337 = vrot.slane %v1324, %v1336
    %v1339 = vsel %vm1127, %v1331, %v1337
    %v1340 = vsel %vm1128, %v1331, %v1337
    %v1342 = vlaneseq
    %v1343 = vshrl.u32 %v1342, 7
    %v1344 = vsub.s32 0, %v1343
    %v1345 = vrot.slane %v1298, %v1344
    %v1348 = vlaneseq
    %v1349 = vshrl.u32 %v1348, 7
    %v1350 = vsub.s32 0, %v1349
    %v1351 = vrot.slane %v1326, %v1350
    %v1353 = vsel %vm1127, %v1345, %v1351
    %v1354 = vsel %vm1128, %v1345, %v1351
    %v1355 = vmul.f32 %v1263, %v1339
    %v1356 = vmul.f32 %v1266, %v1340
    %v1357 = vadd.f32 %v1355, %v1353
    %v1358 = vadd.f32 %v1356, %v1354
    %v1359 = vmax.f32 %v1357, 0.0
    %v1360 = vmax.f32 %v1358, 0.0
    %v1361 = vpack.c.bf16 %v1360, %v1359
    %v1362 = vld [vmem:[%s10] sm:$0xf]
    %v1363 = vld [vmem:[%s10 + $0x4] sm:$0xf]
    %v1364 = vld [vmem:[%s10 + $0x8] sm:$0xf]
    %v1365 = vld [vmem:[%s10 + $0xc] sm:$0xf]
    %v1366 = vld [vmem:[%s10 + $0x10] sm:$0xf]
    %v1367 = vld [vmem:[%s10 + $0x14] sm:$0xf]
    %v1368 = vld [vmem:[%s10 + $0x18] sm:$0xf]
    %v1369 = vld [vmem:[%s10 + $0x1c] sm:$0xf]
    %v1370 = vld [vmem:[%s10 + $0x20] sm:$0xf]
    %v1371 = vld [vmem:[%s10 + $0x24] sm:$0xf]
    %v1372 = vld [vmem:[%s10 + $0x28] sm:$0xf]
    %v1373 = vld [vmem:[%s10 + $0x2c] sm:$0xf]
    %v1374 = vld [vmem:[%s10 + $0x30] sm:$0xf]
    %v1375 = vld [vmem:[%s10 + $0x34] sm:$0xf]
    %v1376 = vld [vmem:[%s10 + $0x38] sm:$0xf]
    %v1377 = vld [vmem:[%s10 + $0x3c] sm:$0xf]
    %v1394 = vunpack.c.l.b16 %v1362
    %v1395 = vunpack.c.l.b16 %v1363
    %v1396 = vunpack.c.l.b16 %v1364
    %v1397 = vunpack.c.l.b16 %v1365
    %v1398 = vunpack.c.l.b16 %v1366
    %v1399 = vunpack.c.l.b16 %v1367
    %v1400 = vunpack.c.l.b16 %v1368
    %v1401 = vunpack.c.l.b16 %v1369
    %v1402 = vunpack.c.l.b16 %v1370
    %v1403 = vunpack.c.l.b16 %v1371
    %v1404 = vunpack.c.l.b16 %v1372
    %v1405 = vunpack.c.l.b16 %v1373
    %v1406 = vunpack.c.l.b16 %v1374
    %v1407 = vunpack.c.l.b16 %v1375
    %v1408 = vunpack.c.l.b16 %v1376
    %v1409 = vunpack.c.l.b16 %v1377
    %v1410 = vpack.c.b16 %v1395, %v1394
    %v1411 = vpack.c.b16 %v1397, %v1396
    %v1412 = vpack.c.b16 %v1399, %v1398
    %v1413 = vpack.c.b16 %v1401, %v1400
    %v1414 = vpack.c.b16 %v1403, %v1402
    %v1415 = vpack.c.b16 %v1405, %v1404
    %v1416 = vpack.c.b16 %v1407, %v1406
    %v1417 = vpack.c.b16 %v1409, %v1408
    %1426 = vmatprep.subr.bf16.mxu0 0
    %1427 = vmatpush1.bf16.msra.mxu0 %v1410
    %1428 = vmatprep.subr.bf16.mxu0 0
    %1429 = vmatpush1.bf16.msra.mxu0 %v1411
    %1430 = vmatprep.subr.bf16.mxu0 0
    %1431 = vmatpush1.bf16.msra.mxu0 %v1412
    %1432 = vmatprep.subr.bf16.mxu0 0
    %1433 = vmatpush1.bf16.msra.mxu0 %v1413
    %1434 = vmatprep.subr.bf16.mxu0 0
    %1435 = vmatpush1.bf16.msra.mxu0 %v1414
    %1436 = vmatprep.subr.bf16.mxu0 0
    %1437 = vmatpush1.bf16.msra.mxu0 %v1415
    %1438 = vmatprep.subr.bf16.mxu0 0
    %1439 = vmatpush1.bf16.msra.mxu0 %v1416
    %1440 = vmatprep.subr.bf16.mxu0 0
    %1441 = vmatpush1.bf16.msra.mxu0 %v1417
    %1442 = vmatprep.subr.bf16.mxu0 0
    %1443 = vmatpush1.bf16.msra.mxu0 0
    %1444 = vmatprep.subr.bf16.mxu0 0
    %1445 = vmatpush1.bf16.msra.mxu0 0
    %1446 = vmatprep.subr.bf16.mxu0 0
    %1447 = vmatpush1.bf16.msra.mxu0 0
    %1448 = vmatprep.subr.bf16.mxu0 0
    %1449 = vmatpush1.bf16.msra.mxu0 0
    %1450 = vmatprep.subr.bf16.mxu0 0
    %1451 = vmatpush1.bf16.msra.mxu0 0
    %1452 = vmatprep.subr.bf16.mxu0 0
    %1453 = vmatpush1.bf16.msra.mxu0 0
    %1454 = vmatprep.subr.bf16.mxu0 0
    %1455 = vmatpush1.bf16.msra.mxu0 0
    %1456 = vmatprep.subr.bf16.mxu0 0
    %1457 = vmatpush1.bf16.msra.mxu0 0
    %1458 = vmatprep.mubr.bf16.mxu0 0
    %1459 = vmatmul.mubr.bf16.gmra.mrb[0].mxu0 %v1361
    %v1460 = vpop.f32.mrb[0].mxu0
    %v1461 = vadd.f32 0.0, %v1460
    %v1462 = vpop.f32.mrb[0].mxu0
    %v1463 = vpop.f32.mrb[0].mxu0
    %v1464 = vadd.f32 0.0, %v1463
    %v1465 = vpop.f32.mrb[0].mxu0
    %1466 = vdwg.mxu0
    %v1467 = vld [vmem:[%s11] sm:$0x1]
    %v1468 = vld [vmem:[%s12] sm:$0x1]
    %v1469 = vmul.f32 %v1461, %v262
    %v1470 = vmul.f32 %v1464, %v263
    %v1471 = vadd.f32 %v1469, %v1470
    %v1472 = vrot.slane %v1471, 4
    %v1473 = vadd.f32 %v1471, %v1472
    %v1474 = vrot.slane %v1473, 2
    %v1475 = vadd.f32 %v1473, %v1474
    %v1476 = vrot.slane %v1475, 1
    %v1477 = vadd.f32 %v1475, %v1476
    %v1478 = vmul.f32 %v1477, 0.5
    %v1479 = vmul.f32 %v1469, %v1461
    %v1480 = vmul.f32 %v1470, %v1464
    %v1481 = vadd.f32 %v1479, %v1480
    %v1482 = vrot.slane %v1481, 4
    %v1483 = vadd.f32 %v1481, %v1482
    %v1484 = vrot.slane %v1483, 2
    %v1485 = vadd.f32 %v1483, %v1484
    %v1486 = vrot.slane %v1485, 1
    %v1487 = vadd.f32 %v1485, %v1486
    %v1488 = vmul.f32 %v1487, 0.5
    %v1489 = vmul.f32 %v1478, %v1478
    %v1490 = vsub.f32 %v1488, %v1489
    %v1491 = vmax.f32 %v1490, 0.0
    %v1492 = vadd.f32 %v1491, 1e-05
    %v1493 = vrsqrt.pop %v1492
    %v1494 = vmul.f32 %v1467, %v1493
    %v1495 = vmul.f32 %v1478, %v1494
    %v1496 = vsub.f32 %v1468, %v1495
    %v1497 = vmul.f32 %v1461, %v272
    %v1498 = vmul.f32 %v1464, %v273
    %v1499 = vadd.f32 %v1497, %v1498
    %v1500 = vrot.slane %v1499, 4
    %v1501 = vadd.f32 %v1499, %v1500
    %v1502 = vrot.slane %v1501, 2
    %v1503 = vadd.f32 %v1501, %v1502
    %v1504 = vrot.slane %v1503, 1
    %v1505 = vadd.f32 %v1503, %v1504
    %v1506 = vmul.f32 %v1505, 0.5
    %v1507 = vmul.f32 %v1497, %v1461
    %v1508 = vmul.f32 %v1498, %v1464
    %v1509 = vadd.f32 %v1507, %v1508
    %v1510 = vrot.slane %v1509, 4
    %v1511 = vadd.f32 %v1509, %v1510
    %v1512 = vrot.slane %v1511, 2
    %v1513 = vadd.f32 %v1511, %v1512
    %v1514 = vrot.slane %v1513, 1
    %v1515 = vadd.f32 %v1513, %v1514
    %v1516 = vmul.f32 %v1515, 0.5
    %v1517 = vmul.f32 %v1506, %v1506
    %v1518 = vsub.f32 %v1516, %v1517
    %v1519 = vmax.f32 %v1518, 0.0
    %v1520 = vadd.f32 %v1519, 1e-05
    %v1521 = vrsqrt.pop %v1520
    %v1522 = vmul.f32 %v1467, %v1521
    %v1523 = vmul.f32 %v1506, %v1522
    %v1524 = vsub.f32 %v1468, %v1523
    %v1526 = vlaneseq
    %v1527 = vshrl.u32 %v1526, 7
    %v1528 = vsub.s32 0, %v1527
    %v1529 = vrot.slane %v1494, %v1528
    %v1532 = vlaneseq
    %v1533 = vshrl.u32 %v1532, 7
    %v1534 = vsub.s32 0, %v1533
    %v1535 = vrot.slane %v1522, %v1534
    %v1537 = vsel %vm1127, %v1529, %v1535
    %v1538 = vsel %vm1128, %v1529, %v1535
    %v1540 = vlaneseq
    %v1541 = vshrl.u32 %v1540, 7
    %v1542 = vsub.s32 0, %v1541
    %v1543 = vrot.slane %v1496, %v1542
    %v1546 = vlaneseq
    %v1547 = vshrl.u32 %v1546, 7
    %v1548 = vsub.s32 0, %v1547
    %v1549 = vrot.slane %v1524, %v1548
    %v1551 = vsel %vm1127, %v1543, %v1549
    %v1552 = vsel %vm1128, %v1543, %v1549
    %v1553 = vmul.f32 %v1461, %v1537
    %v1554 = vmul.f32 %v1464, %v1538
    %v1555 = vadd.f32 %v1553, %v1551
    %v1556 = vadd.f32 %v1554, %v1552
    %1557 = vst [vmem:[%s19] sm:$0xff] %v1555
    %1558 = vst [vmem:[%s19 + $0x8] sm:$0xff] %v1556
    %v1559 = vpack.c.bf16 %v1556, %v1555
    %v1560 = vld [vmem:[#allocation5] sm:$0xf]
    %v1561 = vld [vmem:[#allocation5 + $0x4] sm:$0xf]
    %v1562 = vld [vmem:[#allocation5 + $0x8] sm:$0xf]
    %v1563 = vld [vmem:[#allocation5 + $0xc] sm:$0xf]
    %v1564 = vld [vmem:[#allocation5 + $0x10] sm:$0xf]
    %v1565 = vld [vmem:[#allocation5 + $0x14] sm:$0xf]
    %v1566 = vld [vmem:[#allocation5 + $0x18] sm:$0xf]
    %v1567 = vld [vmem:[#allocation5 + $0x1c] sm:$0xf]
    %v1568 = vld [vmem:[#allocation5 + $0x20] sm:$0xf]
    %v1569 = vld [vmem:[#allocation5 + $0x24] sm:$0xf]
    %v1570 = vld [vmem:[#allocation5 + $0x28] sm:$0xf]
    %v1571 = vld [vmem:[#allocation5 + $0x2c] sm:$0xf]
    %v1572 = vld [vmem:[#allocation5 + $0x30] sm:$0xf]
    %v1573 = vld [vmem:[#allocation5 + $0x34] sm:$0xf]
    %v1574 = vld [vmem:[#allocation5 + $0x38] sm:$0xf]
    %v1575 = vld [vmem:[#allocation5 + $0x3c] sm:$0xf]
    %v1592 = vunpack.c.l.b16 %v1560
    %v1593 = vunpack.c.l.b16 %v1561
    %v1594 = vunpack.c.l.b16 %v1562
    %v1595 = vunpack.c.l.b16 %v1563
    %v1596 = vunpack.c.l.b16 %v1564
    %v1597 = vunpack.c.l.b16 %v1565
    %v1598 = vunpack.c.l.b16 %v1566
    %v1599 = vunpack.c.l.b16 %v1567
    %v1600 = vunpack.c.l.b16 %v1568
    %v1601 = vunpack.c.l.b16 %v1569
    %v1602 = vunpack.c.l.b16 %v1570
    %v1603 = vunpack.c.l.b16 %v1571
    %v1604 = vunpack.c.l.b16 %v1572
    %v1605 = vunpack.c.l.b16 %v1573
    %v1606 = vunpack.c.l.b16 %v1574
    %v1607 = vunpack.c.l.b16 %v1575
    %v1608 = vpack.c.b16 %v1593, %v1592
    %v1609 = vpack.c.b16 %v1595, %v1594
    %v1610 = vpack.c.b16 %v1597, %v1596
    %v1611 = vpack.c.b16 %v1599, %v1598
    %v1612 = vpack.c.b16 %v1601, %v1600
    %v1613 = vpack.c.b16 %v1603, %v1602
    %v1614 = vpack.c.b16 %v1605, %v1604
    %v1615 = vpack.c.b16 %v1607, %v1606
    %1624 = vmatprep.subr.bf16.mxu0 0
    %1625 = vmatpush1.bf16.msra.mxu0 %v1608
    %1626 = vmatprep.subr.bf16.mxu0 0
    %1627 = vmatpush1.bf16.msra.mxu0 %v1609
    %1628 = vmatprep.subr.bf16.mxu0 0
    %1629 = vmatpush1.bf16.msra.mxu0 %v1610
    %1630 = vmatprep.subr.bf16.mxu0 0
    %1631 = vmatpush1.bf16.msra.mxu0 %v1611
    %1632 = vmatprep.subr.bf16.mxu0 0
    %1633 = vmatpush1.bf16.msra.mxu0 %v1612
    %1634 = vmatprep.subr.bf16.mxu0 0
    %1635 = vmatpush1.bf16.msra.mxu0 %v1613
    %1636 = vmatprep.subr.bf16.mxu0 0
    %1637 = vmatpush1.bf16.msra.mxu0 %v1614
    %1638 = vmatprep.subr.bf16.mxu0 0
    %1639 = vmatpush1.bf16.msra.mxu0 %v1615
    %1640 = vmatprep.subr.bf16.mxu0 0
    %1641 = vmatpush1.bf16.msra.mxu0 0
    %1642 = vmatprep.subr.bf16.mxu0 0
    %1643 = vmatpush1.bf16.msra.mxu0 0
    %1644 = vmatprep.subr.bf16.mxu0 0
    %1645 = vmatpush1.bf16.msra.mxu0 0
    %1646 = vmatprep.subr.bf16.mxu0 0
    %1647 = vmatpush1.bf16.msra.mxu0 0
    %1648 = vmatprep.subr.bf16.mxu0 0
    %1649 = vmatpush1.bf16.msra.mxu0 0
    %1650 = vmatprep.subr.bf16.mxu0 0
    %1651 = vmatpush1.bf16.msra.mxu0 0
    %1652 = vmatprep.subr.bf16.mxu0 0
    %1653 = vmatpush1.bf16.msra.mxu0 0
    %1654 = vmatprep.subr.bf16.mxu0 0
    %1655 = vmatpush1.bf16.msra.mxu0 0
    %1656 = vmatprep.mubr.bf16.mxu0 0
    %1657 = vmatmul.mubr.bf16.gmra.mrb[0].mxu0 %v1559
    %v1658 = vpop.f32.mrb[0].mxu0
    %v1659 = vadd.f32 0.0, %v1658
    %v1660 = vpop.f32.mrb[0].mxu0
    %v1661 = vpop.f32.mrb[0].mxu0
    %v1662 = vadd.f32 0.0, %v1661
    %v1663 = vpop.f32.mrb[0].mxu0
    %1664 = vdwg.mxu0
    %v1665 = vld [vmem:[%s14] sm:$0x1]
    %v1666 = vld [vmem:[%s15] sm:$0x1]
    %v1667 = vmul.f32 %v1659, %v262
    %v1668 = vmul.f32 %v1662, %v263
    %v1669 = vadd.f32 %v1667, %v1668
    %v1670 = vrot.slane %v1669, 4
    %v1671 = vadd.f32 %v1669, %v1670
    %v1672 = vrot.slane %v1671, 2
    %v1673 = vadd.f32 %v1671, %v1672
    %v1674 = vrot.slane %v1673, 1
    %v1675 = vadd.f32 %v1673, %v1674
    %v1676 = vmul.f32 %v1675, 0.5
    %v1677 = vmul.f32 %v1667, %v1659
    %v1678 = vmul.f32 %v1668, %v1662
    %v1679 = vadd.f32 %v1677, %v1678
    %v1680 = vrot.slane %v1679, 4
    %v1681 = vadd.f32 %v1679, %v1680
    %v1682 = vrot.slane %v1681, 2
    %v1683 = vadd.f32 %v1681, %v1682
    %v1684 = vrot.slane %v1683, 1
    %v1685 = vadd.f32 %v1683, %v1684
    %v1686 = vmul.f32 %v1685, 0.5
    %v1687 = vmul.f32 %v1676, %v1676
    %v1688 = vsub.f32 %v1686, %v1687
    %v1689 = vmax.f32 %v1688, 0.0
    %v1690 = vadd.f32 %v1689, 1e-05
    %v1691 = vrsqrt.pop %v1690
    %v1692 = vmul.f32 %v1665, %v1691
    %v1693 = vmul.f32 %v1676, %v1692
    %v1694 = vsub.f32 %v1666, %v1693
    %v1695 = vmul.f32 %v1659, %v272
    %v1696 = vmul.f32 %v1662, %v273
    %v1697 = vadd.f32 %v1695, %v1696
    %v1698 = vrot.slane %v1697, 4
    %v1699 = vadd.f32 %v1697, %v1698
    %v1700 = vrot.slane %v1699, 2
    %v1701 = vadd.f32 %v1699, %v1700
    %v1702 = vrot.slane %v1701, 1
    %v1703 = vadd.f32 %v1701, %v1702
    %v1704 = vmul.f32 %v1703, 0.5
    %v1705 = vmul.f32 %v1695, %v1659
    %v1706 = vmul.f32 %v1696, %v1662
    %v1707 = vadd.f32 %v1705, %v1706
    %v1708 = vrot.slane %v1707, 4
    %v1709 = vadd.f32 %v1707, %v1708
    %v1710 = vrot.slane %v1709, 2
    %v1711 = vadd.f32 %v1709, %v1710
    %v1712 = vrot.slane %v1711, 1
    %v1713 = vadd.f32 %v1711, %v1712
    %v1714 = vmul.f32 %v1713, 0.5
    %v1715 = vmul.f32 %v1704, %v1704
    %v1716 = vsub.f32 %v1714, %v1715
    %v1717 = vmax.f32 %v1716, 0.0
    %v1718 = vadd.f32 %v1717, 1e-05
    %v1719 = vrsqrt.pop %v1718
    %v1720 = vmul.f32 %v1665, %v1719
    %v1721 = vmul.f32 %v1704, %v1720
    %v1722 = vsub.f32 %v1666, %v1721
    %v1724 = vlaneseq
    %v1725 = vshrl.u32 %v1724, 7
    %v1726 = vsub.s32 0, %v1725
    %v1727 = vrot.slane %v1692, %v1726
    %v1730 = vlaneseq
    %v1731 = vshrl.u32 %v1730, 7
    %v1732 = vsub.s32 0, %v1731
    %v1733 = vrot.slane %v1720, %v1732
    %v1735 = vsel %vm1127, %v1727, %v1733
    %v1736 = vsel %vm1128, %v1727, %v1733
    %v1738 = vlaneseq
    %v1739 = vshrl.u32 %v1738, 7
    %v1740 = vsub.s32 0, %v1739
    %v1741 = vrot.slane %v1694, %v1740
    %v1744 = vlaneseq
    %v1745 = vshrl.u32 %v1744, 7
    %v1746 = vsub.s32 0, %v1745
    %v1747 = vrot.slane %v1722, %v1746
    %v1749 = vsel %vm1127, %v1741, %v1747
    %v1750 = vsel %vm1128, %v1741, %v1747
    %v1751 = vmul.f32 %v1659, %v1735
    %v1752 = vmul.f32 %v1662, %v1736
    %v1753 = vadd.f32 %v1751, %v1749
    %v1754 = vadd.f32 %v1752, %v1750
    %v1755 = vmax.f32 %v1753, 0.0
    %v1756 = vmax.f32 %v1754, 0.0
    %v1757 = vpack.c.bf16 %v1756, %v1755
    %v1758 = vld [vmem:[#allocation7] sm:$0xf]
    %v1759 = vld [vmem:[#allocation7 + $0x4] sm:$0xf]
    %v1760 = vld [vmem:[#allocation7 + $0x8] sm:$0xf]
    %v1761 = vld [vmem:[#allocation7 + $0xc] sm:$0xf]
    %v1762 = vld [vmem:[#allocation7 + $0x10] sm:$0xf]
    %v1763 = vld [vmem:[#allocation7 + $0x14] sm:$0xf]
    %v1764 = vld [vmem:[#allocation7 + $0x18] sm:$0xf]
    %v1765 = vld [vmem:[#allocation7 + $0x1c] sm:$0xf]
    %v1766 = vld [vmem:[#allocation7 + $0x20] sm:$0xf]
    %v1767 = vld [vmem:[#allocation7 + $0x24] sm:$0xf]
    %v1768 = vld [vmem:[#allocation7 + $0x28] sm:$0xf]
    %v1769 = vld [vmem:[#allocation7 + $0x2c] sm:$0xf]
    %v1770 = vld [vmem:[#allocation7 + $0x30] sm:$0xf]
    %v1771 = vld [vmem:[#allocation7 + $0x34] sm:$0xf]
    %v1772 = vld [vmem:[#allocation7 + $0x38] sm:$0xf]
    %v1773 = vld [vmem:[#allocation7 + $0x3c] sm:$0xf]
    %v1774 = vld [vmem:[%s17] sm:$0x1]
    %v1776 = vlaneseq
    %v1777 = vshrl.u32 %v1776, 7
    %v1778 = vsub.s32 0, %v1777
    %v1779 = vrot.slane %v1774, %v1778
    %v1797 = vunpack.c.l.b16 %v1758
    %v1798 = vunpack.c.l.b16 %v1759
    %v1799 = vunpack.c.l.b16 %v1760
    %v1800 = vunpack.c.l.b16 %v1761
    %v1801 = vunpack.c.l.b16 %v1762
    %v1802 = vunpack.c.l.b16 %v1763
    %v1803 = vunpack.c.l.b16 %v1764
    %v1804 = vunpack.c.l.b16 %v1765
    %v1805 = vunpack.c.l.b16 %v1766
    %v1806 = vunpack.c.l.b16 %v1767
    %v1807 = vunpack.c.l.b16 %v1768
    %v1808 = vunpack.c.l.b16 %v1769
    %v1809 = vunpack.c.l.b16 %v1770
    %v1810 = vunpack.c.l.b16 %v1771
    %v1811 = vunpack.c.l.b16 %v1772
    %v1812 = vunpack.c.l.b16 %v1773
    %v1813 = vpack.c.b16 %v1798, %v1797
    %v1814 = vpack.c.b16 %v1800, %v1799
    %v1815 = vpack.c.b16 %v1802, %v1801
    %v1816 = vpack.c.b16 %v1804, %v1803
    %v1817 = vpack.c.b16 %v1806, %v1805
    %v1818 = vpack.c.b16 %v1808, %v1807
    %v1819 = vpack.c.b16 %v1810, %v1809
    %v1820 = vpack.c.b16 %v1812, %v1811
    %1829 = vmatprep.subr.bf16.mxu0 0
    %1830 = vmatpush1.bf16.msra.mxu0 %v1813
    %1831 = vmatprep.subr.bf16.mxu0 0
    %1832 = vmatpush1.bf16.msra.mxu0 %v1814
    %1833 = vmatprep.subr.bf16.mxu0 0
    %1834 = vmatpush1.bf16.msra.mxu0 %v1815
    %1835 = vmatprep.subr.bf16.mxu0 0
    %1836 = vmatpush1.bf16.msra.mxu0 %v1816
    %1837 = vmatprep.subr.bf16.mxu0 0
    %1838 = vmatpush1.bf16.msra.mxu0 %v1817
    %1839 = vmatprep.subr.bf16.mxu0 0
    %1840 = vmatpush1.bf16.msra.mxu0 %v1818
    %1841 = vmatprep.subr.bf16.mxu0 0
    %1842 = vmatpush1.bf16.msra.mxu0 %v1819
    %1843 = vmatprep.subr.bf16.mxu0 0
    %1844 = vmatpush1.bf16.msra.mxu0 %v1820
    %1845 = vmatprep.subr.bf16.mxu0 0
    %1846 = vmatpush1.bf16.msra.mxu0 0
    %1847 = vmatprep.subr.bf16.mxu0 0
    %1848 = vmatpush1.bf16.msra.mxu0 0
    %1849 = vmatprep.subr.bf16.mxu0 0
    %1850 = vmatpush1.bf16.msra.mxu0 0
    %1851 = vmatprep.subr.bf16.mxu0 0
    %1852 = vmatpush1.bf16.msra.mxu0 0
    %1853 = vmatprep.subr.bf16.mxu0 0
    %1854 = vmatpush1.bf16.msra.mxu0 0
    %1855 = vmatprep.subr.bf16.mxu0 0
    %1856 = vmatpush1.bf16.msra.mxu0 0
    %1857 = vmatprep.subr.bf16.mxu0 0
    %1858 = vmatpush1.bf16.msra.mxu0 0
    %1859 = vmatprep.subr.bf16.mxu0 0
    %1860 = vmatpush1.bf16.msra.mxu0 0
    %1861 = vmatprep.mubr.bf16.mxu0 0
    %1862 = vmatmul.mubr.bf16.gmra.mrb[0].mxu0 %v1757
    %v1863 = vpop.f32.mrb[0].mxu0
    %v1864 = vadd.f32 %v1779, %v1863
    %v1865 = vpop.f32.mrb[0].mxu0
    %v1866 = vpop.f32.mrb[0].mxu0
    %v1867 = vadd.f32 %v1779, %v1866
    %v1868 = vpop.f32.mrb[0].mxu0
    %1869 = vdwg.mxu0
    %1870 = vst [vmem:[%s20] sm:$0xff] %v1864
    %1871 = vst [vmem:[%s20 + $0x8] sm:$0xff] %v1867
    // Predicated region
    $region86: #{fwd.1} parent=1 // pred_check
      _
    $region87: #{fwd.1} parent=1 // pred_check_branch
      %1873 = sbr.rel (0) target = $region89
    $region88: #{fwd.1} parent=1 // pred_region
      _
    $region89: #{fwd.1} parent=1 // pred_fallthru
      _
    // Predicated region
    $region90: #{fwd.1} parent=1 // pred_check
      _
    $region91: #{fwd.1} parent=1 // pred_check_branch
      %1875 = sbr.rel (0) target = $region93
    $region92: #{fwd.1} parent=1 // pred_region
      _
    $region93: #{fwd.1} parent=1 // pred_fallthru
      _
    // Predicated region
    $region94: #{fwd.1} parent=1 // pred_check
      _
    $region95: #{fwd.1} parent=1 // pred_check_branch
      %1877 = sbr.rel (0) target = $region97
    $region96: #{fwd.1} parent=1 // pred_region
      _
    $region97: #{fwd.1} parent=1 // pred_fallthru
      _
    // Predicated region
    $region98: #{fwd.1} parent=1 // pred_check
      _
    $region99: #{fwd.1} parent=1 // pred_check_branch
      %1879 = sbr.rel (0) target = $region101
    $region100: #{fwd.1} parent=1 // pred_region
      _
    $region101: #{fwd.1} parent=1 // pred_fallthru
      _
    // Predicated region
    $region102: #{fwd.1} parent=1 // pred_check
      _
    $region103: #{fwd.1} parent=1 // pred_check_branch
      %1881 = sbr.rel (0) target = $region105
    $region104: #{fwd.1} parent=1 // pred_region
      _
    $region105: #{fwd.1} parent=1 // pred_fallthru
      _
    // Predicated region
    $region106: #{fwd.1} parent=1 // pred_check
      _
    $region107: #{fwd.1} parent=1 // pred_check_branch
      %1883 = sbr.rel (0) target = $region109
    $region108: #{fwd.1} parent=1 // pred_region
      _
    $region109: #{fwd.1} parent=1 // pred_fallthru
      _
    %1884 = vsyncpa [#allocation4], 1
    %1885 = vsyncpa [#allocation6], 1

</llo_original>
